<compile_context>
chip_gen: v6e
topology: v6e:2x2x1
jax: 0.10.0
libtpu: 0.0.40
codegen_flags: <defaults>
</compile_context>

<pallas_src>
import functools

import jax
import jax.numpy as jnp
from jax.experimental import pallas as pl
from jax.experimental.pallas import tpu as pltpu

LANE = 128  # lane-dense padded width for the fc3 output


def _lstm_kernel(x_ref, w1t_ref, b1_ref, wih_ref, bg_ref, whh_ref,
                 w3t_ref, b3_ref, out_ref, *, B, T, H):
    f32 = jnp.float32

    # ---------------- Hoisted, non-recurrent work ----------------
    # fc1 + tanh over all T*B rows in one matmul.
    x = x_ref[...]                                                       # (T*B, n_in)
    z = jnp.tanh(jnp.dot(x, w1t_ref[...], preferred_element_type=f32)
                 + b1_ref[...])                                          # (T*B, H)

    # Fused input-side gate pre-activations for the whole sequence:
    # one (T*B, H) x (H, 4H) matmul, both LSTM biases folded into bg.
    gx = jnp.dot(z, wih_ref[...], preferred_element_type=f32) + bg_ref[...]   # (T*B, 4H)

    whh = whh_ref[...]                                                   # (H, 4H), read once

    # Lane mask selecting the g-gate lanes [2H, 3H) of the fused gate vector.
    col = jax.lax.broadcasted_iota(jnp.int32, (B, 4 * H), 1)
    g_mask = (col >= 2 * H) & (col < 3 * H)

    # ---------------- Serial recurrence (critical path) ----------------
    # Per step: ONE (B,H)x(H,4H) matmul, one sigmoid + one tanh on the fused gate
    # vector, one lane-select, and the element-wise (c, h) update.  Hidden states
    # stay in registers (no VMEM staging).
    h = jnp.zeros((B, H), f32)
    c = jnp.zeros((B, H), f32)
    hs = []
    for t in range(T):                                                   # T is tiny -> full unroll
        gates = gx[t * B:(t + 1) * B, :] + jnp.dot(h, whh, preferred_element_type=f32)
        act = jnp.where(g_mask, jnp.tanh(gates), jax.nn.sigmoid(gates))  # (B, 4H)
        i_g = act[:, 0 * H:1 * H]
        f_g = act[:, 1 * H:2 * H]
        g_g = act[:, 2 * H:3 * H]
        o_g = act[:, 3 * H:4 * H]
        c = f_g * c + i_g * g_g
        h = o_g * jnp.tanh(c)
        hs.append(h)

    # ---------------- Hoisted fc3 over the stacked hidden states ----------------
    hs_all = jnp.concatenate(hs, axis=0)                                 # (T*B, H), time-major
    out_ref[...] = (jnp.dot(hs_all, w3t_ref[...], preferred_element_type=f32)
                    + b3_ref[...])                                       # (T*B, 128)


def pack_params(params, n_out_pad=LANE):
    """One-time repack of PyTorch-layout params into the kernel layout.

    Call once and reuse; keeps per-forward XLA dispatch overhead off the hot path.
    """
    w1, b1, w_ih, w_hh, b_ih, b_hh, w3, b3 = params
    H, n_in = w1.shape
    n_act = w3.shape[0]

    w1_t = jnp.transpose(w1)                                             # (n_in, H)
    b1_r = b1.reshape(1, H)
    # Fused per-gate weights: columns ordered (i, f, g, o) along the lane axis.
    wih_cat = jnp.transpose(w_ih)                                        # (H, 4H)
    whh_cat = jnp.transpose(w_hh)                                        # (H, 4H)
    bg = (b_ih + b_hh).reshape(1, 4 * H)                                 # folded LSTM biases
    # fc3 zero-padded to a lane-dense (128-wide) output.
    w3_pad = jnp.zeros((H, n_out_pad), jnp.float32).at[:, :n_act].set(jnp.transpose(w3))
    b3_pad = jnp.zeros((1, n_out_pad), jnp.float32).at[:, :n_act].set(b3.reshape(1, n_act))

    meta = {"H": H, "n_in": n_in, "n_act": n_act, "n_out_pad": n_out_pad}
    return (w1_t, b1_r, wih_cat, bg, whh_cat, w3_pad, b3_pad), meta


def pytorch_lstm_forward(x, packed, meta):
    """x: (B, T, n_inputs) float32 -> (B, T, n_actions) float32."""
    B, T, n_in = x.shape
    H, n_act, n_pad = meta["H"], meta["n_act"], meta["n_out_pad"]
    w1_t, b1_r, wih_cat, bg, whh_cat, w3_pad, b3_pad = packed

    # Time-major flattening: row t*B + b, so step t reads a contiguous static row block.
    x_tm = jnp.transpose(x, (1, 0, 2)).reshape(T * B, n_in)

    kernel = functools.partial(_lstm_kernel, B=B, T=T, H=H)

    out_tm = pl.pallas_call(
        kernel,
        out_shape=jax.ShapeDtypeStruct((T * B, n_pad), jnp.float32),
        grid_spec=pltpu.PrefetchScalarGridSpec(
            num_scalar_prefetch=0,
            grid=(1,),                                                   # single invocation
            in_specs=[
                pl.BlockSpec((T * B, n_in), lambda i: (0, 0)),           # x (time-major, flat)
                pl.BlockSpec((n_in, H), lambda i: (0, 0)),               # fc1 weight (transposed)
                pl.BlockSpec((1, H), lambda i: (0, 0)),                  # fc1 bias
                pl.BlockSpec((H, 4 * H), lambda i: (0, 0)),              # fused W_ih (transposed)
                pl.BlockSpec((1, 4 * H), lambda i: (0, 0)),              # folded LSTM bias
                pl.BlockSpec((H, 4 * H), lambda i: (0, 0)),              # fused W_hh (transposed)
                pl.BlockSpec((H, n_pad), lambda i: (0, 0)),              # fc3 weight (padded, transposed)
                pl.BlockSpec((1, n_pad), lambda i: (0, 0)),              # fc3 bias (padded)
            ],
            out_specs=pl.BlockSpec((T * B, n_pad), lambda i: (0, 0)),
        ),
        compiler_params=pltpu.CompilerParams(
            dimension_semantics=("arbitrary",),
        ),
    )(x_tm, w1_t, b1_r, wih_cat, bg, whh_cat, w3_pad, b3_pad)

    out = out_tm[:, :n_act].reshape(T, B, n_act)                         # drop lane padding
    return jnp.transpose(out, (1, 0, 2))                                 # (B, T, n_act)


def init_params(key, n_inputs=30, n_hidden=24, n_actions=18):
    """Deterministic PyTorch-style uniform(-1/sqrt(fan), 1/sqrt(fan)) init."""
    ks = jax.random.split(key, 8)

    def u(k, shape, fan):
        bound = 1.0 / jnp.sqrt(fan)
        return jax.random.uniform(k, shape, jnp.float32, -bound, bound)

    w1 = u(ks[0], (n_hidden, n_inputs), n_inputs)
    b1 = u(ks[1], (n_hidden,), n_inputs)
    w_ih = u(ks[2], (4 * n_hidden, n_hidden), n_hidden)
    w_hh = u(ks[3], (4 * n_hidden, n_hidden), n_hidden)
    b_ih = u(ks[4], (4 * n_hidden,), n_hidden)
    b_hh = u(ks[5], (4 * n_hidden,), n_hidden)
    w3 = u(ks[6], (n_actions, n_hidden), n_hidden)
    b3 = u(ks[7], (n_actions,), n_hidden)
    return (w1, b1, w_ih, w_hh, b_ih, b_hh, w3, b3)


def _reference_forward(x, params):
    """Pure-JAX reference matching PyTorch nn.LSTM (batch_first) semantics."""
    w1, b1, w_ih, w_hh, b_ih, b_hh, w3, b3 = params
    B, T, _ = x.shape
    H = w1.shape[0]
    z = jnp.tanh(x @ w1.T + b1)                                          # (B, T, H)

    def step(carry, z_t):
        h, c = carry
        gates = z_t @ w_ih.T + b_ih + h @ w_hh.T + b_hh
        i = jax.nn.sigmoid(gates[:, 0 * H:1 * H])
        f = jax.nn.sigmoid(gates[:, 1 * H:2 * H])
        g = jnp.tanh(gates[:, 2 * H:3 * H])
        o = jax.nn.sigmoid(gates[:, 3 * H:4 * H])
        c = f * c + i * g
        h = o * jnp.tanh(c)
        return (h, c), h

    h0 = jnp.zeros((B, H), jnp.float32)
    c0 = jnp.zeros((B, H), jnp.float32)
    _, hs = jax.lax.scan(step, (h0, c0), jnp.transpose(z, (1, 0, 2)))
    hs = jnp.transpose(hs, (1, 0, 2))                                    # (B, T, H)
    return hs @ w3.T + b3


if __name__ == "__main__":
    n_inputs, n_hidden, n_actions = 30, 24, 18
    B, T = 2, 8

    key = jax.random.PRNGKey(0)
    k_x, k_p = jax.random.split(key)
    x = jax.random.normal(k_x, (B, T, n_inputs), jnp.float32)
    params = init_params(k_p, n_inputs, n_hidden, n_actions)

    # One-time parameter repack (amortized across forwards).
    packed, meta = pack_params(params)
    packed = jax.block_until_ready(packed)

    out = pytorch_lstm_forward(x, packed, meta)
    out = jax.block_until_ready(out)

    ref = _reference_forward(x, params)
    assert out.shape == (B, T, n_actions)
    assert jnp.allclose(out, ref, atol=1e-4, rtol=1e-4), "mismatch vs reference"

    print("KERNEL_OK")
</pallas_src>

<mosaic_0001>
module attributes {stable_mosaic.version = 11 : i64} {
  func.func @_lstm_kernel(%arg0: i32, %arg1: memref<16x30xf32, #tpu.memory_space<vmem>>, %arg2: memref<30x24xf32, #tpu.memory_space<vmem>>, %arg3: memref<1x24xf32, #tpu.memory_space<vmem>>, %arg4: memref<24x96xf32, #tpu.memory_space<vmem>>, %arg5: memref<1x96xf32, #tpu.memory_space<vmem>>, %arg6: memref<24x96xf32, #tpu.memory_space<vmem>>, %arg7: memref<24x128xf32, #tpu.memory_space<vmem>>, %arg8: memref<1x128xf32, #tpu.memory_space<vmem>>, %arg9: memref<16x128xf32, #tpu.memory_space<vmem>>) attributes {dimension_semantics = [#tpu.dimension_semantics<arbitrary>], iteration_bounds = array<i64: 1>, scalar_prefetch = 0 : i64, scratch_operands = 0 : i64, tpu.core_type = #tpu.core_type<tc>, window_params = [{pipeline_mode = #tpu.pipeline_mode<synchronous>, transform_indices = @transform_0, window_bounds = array<i64: 16, 30>}, {pipeline_mode = #tpu.pipeline_mode<synchronous>, transform_indices = @transform_1, window_bounds = array<i64: 30, 24>}, {pipeline_mode = #tpu.pipeline_mode<synchronous>, transform_indices = @transform_2, window_bounds = array<i64: 1, 24>}, {pipeline_mode = #tpu.pipeline_mode<synchronous>, transform_indices = @transform_3, window_bounds = array<i64: 24, 96>}, {pipeline_mode = #tpu.pipeline_mode<synchronous>, transform_indices = @transform_4, window_bounds = array<i64: 1, 96>}, {pipeline_mode = #tpu.pipeline_mode<synchronous>, transform_indices = @transform_5, window_bounds = array<i64: 24, 96>}, {pipeline_mode = #tpu.pipeline_mode<synchronous>, transform_indices = @transform_6, window_bounds = array<i64: 24, 128>}, {pipeline_mode = #tpu.pipeline_mode<synchronous>, transform_indices = @transform_7, window_bounds = array<i64: 1, 128>}, {pipeline_mode = #tpu.pipeline_mode<synchronous>, transform_indices = @transform_8, window_bounds = array<i64: 16, 128>}]} {
    %c0 = arith.constant 0 : index
    %c0_0 = arith.constant 0 : index
    %0 = vector.load %arg1[%c0, %c0_0] : memref<16x30xf32, #tpu.memory_space<vmem>>, vector<16x30xf32>
    %c0_1 = arith.constant 0 : index
    %c0_2 = arith.constant 0 : index
    %1 = vector.load %arg2[%c0_1, %c0_2] : memref<30x24xf32, #tpu.memory_space<vmem>>, vector<30x24xf32>
    %cst = arith.constant dense<0.000000e+00> : vector<16x24xf32>
    %2 = tpu.matmul %0, %1, %cst {dimension_numbers = #tpu.dot_dimension_numbers<[1], [0], [0], [1], [0, 0, 1, 1], [], []>} : vector<16x30xf32>, vector<30x24xf32>, vector<16x24xf32> -> vector<16x24xf32>
    %c0_3 = arith.constant 0 : index
    %c0_4 = arith.constant 0 : index
    %3 = vector.load %arg3[%c0_3, %c0_4] : memref<1x24xf32, #tpu.memory_space<vmem>>, vector<1x24xf32>
    %4 = vector.broadcast %3 : vector<1x24xf32> to vector<16x24xf32>
    %5 = arith.addf %2, %4 : vector<16x24xf32>
    %6 = math.tanh %5 : vector<16x24xf32>
    %c0_5 = arith.constant 0 : index
    %c0_6 = arith.constant 0 : index
    %7 = vector.load %arg4[%c0_5, %c0_6] : memref<24x96xf32, #tpu.memory_space<vmem>>, vector<24x96xf32>
    %cst_7 = arith.constant dense<0.000000e+00> : vector<16x96xf32>
    %8 = tpu.matmul %6, %7, %cst_7 {dimension_numbers = #tpu.dot_dimension_numbers<[1], [0], [0], [1], [0, 0, 1, 1], [], []>} : vector<16x24xf32>, vector<24x96xf32>, vector<16x96xf32> -> vector<16x96xf32>
    %c0_8 = arith.constant 0 : index
    %c0_9 = arith.constant 0 : index
    %9 = vector.load %arg5[%c0_8, %c0_9] : memref<1x96xf32, #tpu.memory_space<vmem>>, vector<1x96xf32>
    %10 = vector.broadcast %9 : vector<1x96xf32> to vector<16x96xf32>
    %11 = arith.addf %8, %10 : vector<16x96xf32>
    %c0_10 = arith.constant 0 : index
    %c0_11 = arith.constant 0 : index
    %12 = vector.load %arg6[%c0_10, %c0_11] : memref<24x96xf32, #tpu.memory_space<vmem>>, vector<24x96xf32>
    %13 = tpu.iota {dimensions = array<i32: 1>} : vector<2x96xi32>
    %c48_i32 = arith.constant 48 : i32
    %14 = vector.broadcast %c48_i32 : i32 to vector<2x96xi32>
    %15 = arith.cmpi sge, %13, %14 : vector<2x96xi32>
    %c72_i32 = arith.constant 72 : i32
    %16 = vector.broadcast %c72_i32 : i32 to vector<2x96xi32>
    %17 = arith.cmpi slt, %13, %16 : vector<2x96xi32>
    %18 = arith.andi %15, %17 : vector<2x96xi1>
    %cst_12 = arith.constant 0.000000e+00 : f32
    %19 = vector.broadcast %cst_12 : f32 to vector<2x24xf32>
    %cst_13 = arith.constant 0.000000e+00 : f32
    %20 = vector.broadcast %cst_13 : f32 to vector<2x24xf32>
    %21 = vector.extract_strided_slice %11 {offsets = [0, 0], sizes = [2, 96], strides = [1, 1]} : vector<16x96xf32> to vector<2x96xf32>
    %cst_14 = arith.constant dense<0.000000e+00> : vector<2x96xf32>
    %22 = tpu.matmul %19, %12, %cst_14 {dimension_numbers = #tpu.dot_dimension_numbers<[1], [0], [0], [1], [0, 0, 1, 1], [], []>} : vector<2x24xf32>, vector<24x96xf32>, vector<2x96xf32> -> vector<2x96xf32>
    %23 = arith.addf %21, %22 : vector<2x96xf32>
    %24 = math.tanh %23 : vector<2x96xf32>
    %25 = arith.negf %23 : vector<2x96xf32>
    %26 = math.exp %25 : vector<2x96xf32>
    %cst_15 = arith.constant 1.000000e+00 : f32
    %27 = vector.broadcast %cst_15 : f32 to vector<2x96xf32>
    %28 = arith.addf %27, %26 : vector<2x96xf32>
    %29 = arith.divf %27, %28 : vector<2x96xf32>
    %30 = arith.select %18, %24, %29 : vector<2x96xi1>, vector<2x96xf32>
    %31 = vector.extract_strided_slice %30 {offsets = [0, 0], sizes = [2, 24], strides = [1, 1]} : vector<2x96xf32> to vector<2x24xf32>
    %32 = vector.extract_strided_slice %30 {offsets = [0, 24], sizes = [2, 24], strides = [1, 1]} : vector<2x96xf32> to vector<2x24xf32>
    %33 = vector.extract_strided_slice %30 {offsets = [0, 48], sizes = [2, 24], strides = [1, 1]} : vector<2x96xf32> to vector<2x24xf32>
    %34 = vector.extract_strided_slice %30 {offsets = [0, 72], sizes = [2, 24], strides = [1, 1]} : vector<2x96xf32> to vector<2x24xf32>
    %35 = arith.mulf %32, %20 : vector<2x24xf32>
    %36 = arith.mulf %31, %33 : vector<2x24xf32>
    %37 = arith.addf %35, %36 : vector<2x24xf32>
    %38 = math.tanh %37 : vector<2x24xf32>
    %39 = arith.mulf %34, %38 : vector<2x24xf32>
    %40 = vector.extract_strided_slice %11 {offsets = [2, 0], sizes = [2, 96], strides = [1, 1]} : vector<16x96xf32> to vector<2x96xf32>
    %cst_16 = arith.constant dense<0.000000e+00> : vector<2x96xf32>
    %41 = tpu.matmul %39, %12, %cst_16 {dimension_numbers = #tpu.dot_dimension_numbers<[1], [0], [0], [1], [0, 0, 1, 1], [], []>} : vector<2x24xf32>, vector<24x96xf32>, vector<2x96xf32> -> vector<2x96xf32>
    %42 = arith.addf %40, %41 : vector<2x96xf32>
    %43 = math.tanh %42 : vector<2x96xf32>
    %44 = arith.negf %42 : vector<2x96xf32>
    %45 = math.exp %44 : vector<2x96xf32>
    %cst_17 = arith.constant 1.000000e+00 : f32
    %46 = vector.broadcast %cst_17 : f32 to vector<2x96xf32>
    %47 = arith.addf %46, %45 : vector<2x96xf32>
    %48 = arith.divf %46, %47 : vector<2x96xf32>
    %49 = arith.select %18, %43, %48 : vector<2x96xi1>, vector<2x96xf32>
    %50 = vector.extract_strided_slice %49 {offsets = [0, 0], sizes = [2, 24], strides = [1, 1]} : vector<2x96xf32> to vector<2x24xf32>
    %51 = vector.extract_strided_slice %49 {offsets = [0, 24], sizes = [2, 24], strides = [1, 1]} : vector<2x96xf32> to vector<2x24xf32>
    %52 = vector.extract_strided_slice %49 {offsets = [0, 48], sizes = [2, 24], strides = [1, 1]} : vector<2x96xf32> to vector<2x24xf32>
    %53 = vector.extract_strided_slice %49 {offsets = [0, 72], sizes = [2, 24], strides = [1, 1]} : vector<2x96xf32> to vector<2x24xf32>
    %54 = arith.mulf %51, %37 : vector<2x24xf32>
    %55 = arith.mulf %50, %52 : vector<2x24xf32>
    %56 = arith.addf %54, %55 : vector<2x24xf32>
    %57 = math.tanh %56 : vector<2x24xf32>
    %58 = arith.mulf %53, %57 : vector<2x24xf32>
    %59 = vector.extract_strided_slice %11 {offsets = [4, 0], sizes = [2, 96], strides = [1, 1]} : vector<16x96xf32> to vector<2x96xf32>
    %cst_18 = arith.constant dense<0.000000e+00> : vector<2x96xf32>
    %60 = tpu.matmul %58, %12, %cst_18 {dimension_numbers = #tpu.dot_dimension_numbers<[1], [0], [0], [1], [0, 0, 1, 1], [], []>} : vector<2x24xf32>, vector<24x96xf32>, vector<2x96xf32> -> vector<2x96xf32>
    %61 = arith.addf %59, %60 : vector<2x96xf32>
    %62 = math.tanh %61 : vector<2x96xf32>
    %63 = arith.negf %61 : vector<2x96xf32>
    %64 = math.exp %63 : vector<2x96xf32>
    %cst_19 = arith.constant 1.000000e+00 : f32
    %65 = vector.broadcast %cst_19 : f32 to vector<2x96xf32>
    %66 = arith.addf %65, %64 : vector<2x96xf32>
    %67 = arith.divf %65, %66 : vector<2x96xf32>
    %68 = arith.select %18, %62, %67 : vector<2x96xi1>, vector<2x96xf32>
    %69 = vector.extract_strided_slice %68 {offsets = [0, 0], sizes = [2, 24], strides = [1, 1]} : vector<2x96xf32> to vector<2x24xf32>
    %70 = vector.extract_strided_slice %68 {offsets = [0, 24], sizes = [2, 24], strides = [1, 1]} : vector<2x96xf32> to vector<2x24xf32>
    %71 = vector.extract_strided_slice %68 {offsets = [0, 48], sizes = [2, 24], strides = [1, 1]} : vector<2x96xf32> to vector<2x24xf32>
    %72 = vector.extract_strided_slice %68 {offsets = [0, 72], sizes = [2, 24], strides = [1, 1]} : vector<2x96xf32> to vector<2x24xf32>
    %73 = arith.mulf %70, %56 : vector<2x24xf32>
    %74 = arith.mulf %69, %71 : vector<2x24xf32>
    %75 = arith.addf %73, %74 : vector<2x24xf32>
    %76 = math.tanh %75 : vector<2x24xf32>
    %77 = arith.mulf %72, %76 : vector<2x24xf32>
    %78 = vector.extract_strided_slice %11 {offsets = [6, 0], sizes = [2, 96], strides = [1, 1]} : vector<16x96xf32> to vector<2x96xf32>
    %cst_20 = arith.constant dense<0.000000e+00> : vector<2x96xf32>
    %79 = tpu.matmul %77, %12, %cst_20 {dimension_numbers = #tpu.dot_dimension_numbers<[1], [0], [0], [1], [0, 0, 1, 1], [], []>} : vector<2x24xf32>, vector<24x96xf32>, vector<2x96xf32> -> vector<2x96xf32>
    %80 = arith.addf %78, %79 : vector<2x96xf32>
    %81 = math.tanh %80 : vector<2x96xf32>
    %82 = arith.negf %80 : vector<2x96xf32>
    %83 = math.exp %82 : vector<2x96xf32>
    %cst_21 = arith.constant 1.000000e+00 : f32
    %84 = vector.broadcast %cst_21 : f32 to vector<2x96xf32>
    %85 = arith.addf %84, %83 : vector<2x96xf32>
    %86 = arith.divf %84, %85 : vector<2x96xf32>
    %87 = arith.select %18, %81, %86 : vector<2x96xi1>, vector<2x96xf32>
    %88 = vector.extract_strided_slice %87 {offsets = [0, 0], sizes = [2, 24], strides = [1, 1]} : vector<2x96xf32> to vector<2x24xf32>
    %89 = vector.extract_strided_slice %87 {offsets = [0, 24], sizes = [2, 24], strides = [1, 1]} : vector<2x96xf32> to vector<2x24xf32>
    %90 = vector.extract_strided_slice %87 {offsets = [0, 48], sizes = [2, 24], strides = [1, 1]} : vector<2x96xf32> to vector<2x24xf32>
    %91 = vector.extract_strided_slice %87 {offsets = [0, 72], sizes = [2, 24], strides = [1, 1]} : vector<2x96xf32> to vector<2x24xf32>
    %92 = arith.mulf %89, %75 : vector<2x24xf32>
    %93 = arith.mulf %88, %90 : vector<2x24xf32>
    %94 = arith.addf %92, %93 : vector<2x24xf32>
    %95 = math.tanh %94 : vector<2x24xf32>
    %96 = arith.mulf %91, %95 : vector<2x24xf32>
    %97 = vector.extract_strided_slice %11 {offsets = [8, 0], sizes = [2, 96], strides = [1, 1]} : vector<16x96xf32> to vector<2x96xf32>
    %cst_22 = arith.constant dense<0.000000e+00> : vector<2x96xf32>
    %98 = tpu.matmul %96, %12, %cst_22 {dimension_numbers = #tpu.dot_dimension_numbers<[1], [0], [0], [1], [0, 0, 1, 1], [], []>} : vector<2x24xf32>, vector<24x96xf32>, vector<2x96xf32> -> vector<2x96xf32>
    %99 = arith.addf %97, %98 : vector<2x96xf32>
    %100 = math.tanh %99 : vector<2x96xf32>
    %101 = arith.negf %99 : vector<2x96xf32>
    %102 = math.exp %101 : vector<2x96xf32>
    %cst_23 = arith.constant 1.000000e+00 : f32
    %103 = vector.broadcast %cst_23 : f32 to vector<2x96xf32>
    %104 = arith.addf %103, %102 : vector<2x96xf32>
    %105 = arith.divf %103, %104 : vector<2x96xf32>
    %106 = arith.select %18, %100, %105 : vector<2x96xi1>, vector<2x96xf32>
    %107 = vector.extract_strided_slice %106 {offsets = [0, 0], sizes = [2, 24], strides = [1, 1]} : vector<2x96xf32> to vector<2x24xf32>
    %108 = vector.extract_strided_slice %106 {offsets = [0, 24], sizes = [2, 24], strides = [1, 1]} : vector<2x96xf32> to vector<2x24xf32>
    %109 = vector.extract_strided_slice %106 {offsets = [0, 48], sizes = [2, 24], strides = [1, 1]} : vector<2x96xf32> to vector<2x24xf32>
    %110 = vector.extract_strided_slice %106 {offsets = [0, 72], sizes = [2, 24], strides = [1, 1]} : vector<2x96xf32> to vector<2x24xf32>
    %111 = arith.mulf %108, %94 : vector<2x24xf32>
    %112 = arith.mulf %107, %109 : vector<2x24xf32>
    %113 = arith.addf %111, %112 : vector<2x24xf32>
    %114 = math.tanh %113 : vector<2x24xf32>
    %115 = arith.mulf %110, %114 : vector<2x24xf32>
    %116 = vector.extract_strided_slice %11 {offsets = [10, 0], sizes = [2, 96], strides = [1, 1]} : vector<16x96xf32> to vector<2x96xf32>
    %cst_24 = arith.constant dense<0.000000e+00> : vector<2x96xf32>
    %117 = tpu.matmul %115, %12, %cst_24 {dimension_numbers = #tpu.dot_dimension_numbers<[1], [0], [0], [1], [0, 0, 1, 1], [], []>} : vector<2x24xf32>, vector<24x96xf32>, vector<2x96xf32> -> vector<2x96xf32>
    %118 = arith.addf %116, %117 : vector<2x96xf32>
    %119 = math.tanh %118 : vector<2x96xf32>
    %120 = arith.negf %118 : vector<2x96xf32>
    %121 = math.exp %120 : vector<2x96xf32>
    %cst_25 = arith.constant 1.000000e+00 : f32
    %122 = vector.broadcast %cst_25 : f32 to vector<2x96xf32>
    %123 = arith.addf %122, %121 : vector<2x96xf32>
    %124 = arith.divf %122, %123 : vector<2x96xf32>
    %125 = arith.select %18, %119, %124 : vector<2x96xi1>, vector<2x96xf32>
    %126 = vector.extract_strided_slice %125 {offsets = [0, 0], sizes = [2, 24], strides = [1, 1]} : vector<2x96xf32> to vector<2x24xf32>
    %127 = vector.extract_strided_slice %125 {offsets = [0, 24], sizes = [2, 24], strides = [1, 1]} : vector<2x96xf32> to vector<2x24xf32>
    %128 = vector.extract_strided_slice %125 {offsets = [0, 48], sizes = [2, 24], strides = [1, 1]} : vector<2x96xf32> to vector<2x24xf32>
    %129 = vector.extract_strided_slice %125 {offsets = [0, 72], sizes = [2, 24], strides = [1, 1]} : vector<2x96xf32> to vector<2x24xf32>
    %130 = arith.mulf %127, %113 : vector<2x24xf32>
    %131 = arith.mulf %126, %128 : vector<2x24xf32>
    %132 = arith.addf %130, %131 : vector<2x24xf32>
    %133 = math.tanh %132 : vector<2x24xf32>
    %134 = arith.mulf %129, %133 : vector<2x24xf32>
    %135 = vector.extract_strided_slice %11 {offsets = [12, 0], sizes = [2, 96], strides = [1, 1]} : vector<16x96xf32> to vector<2x96xf32>
    %cst_26 = arith.constant dense<0.000000e+00> : vector<2x96xf32>
    %136 = tpu.matmul %134, %12, %cst_26 {dimension_numbers = #tpu.dot_dimension_numbers<[1], [0], [0], [1], [0, 0, 1, 1], [], []>} : vector<2x24xf32>, vector<24x96xf32>, vector<2x96xf32> -> vector<2x96xf32>
    %137 = arith.addf %135, %136 : vector<2x96xf32>
    %138 = math.tanh %137 : vector<2x96xf32>
    %139 = arith.negf %137 : vector<2x96xf32>
    %140 = math.exp %139 : vector<2x96xf32>
    %cst_27 = arith.constant 1.000000e+00 : f32
    %141 = vector.broadcast %cst_27 : f32 to vector<2x96xf32>
    %142 = arith.addf %141, %140 : vector<2x96xf32>
    %143 = arith.divf %141, %142 : vector<2x96xf32>
    %144 = arith.select %18, %138, %143 : vector<2x96xi1>, vector<2x96xf32>
    %145 = vector.extract_strided_slice %144 {offsets = [0, 0], sizes = [2, 24], strides = [1, 1]} : vector<2x96xf32> to vector<2x24xf32>
    %146 = vector.extract_strided_slice %144 {offsets = [0, 24], sizes = [2, 24], strides = [1, 1]} : vector<2x96xf32> to vector<2x24xf32>
    %147 = vector.extract_strided_slice %144 {offsets = [0, 48], sizes = [2, 24], strides = [1, 1]} : vector<2x96xf32> to vector<2x24xf32>
    %148 = vector.extract_strided_slice %144 {offsets = [0, 72], sizes = [2, 24], strides = [1, 1]} : vector<2x96xf32> to vector<2x24xf32>
    %149 = arith.mulf %146, %132 : vector<2x24xf32>
    %150 = arith.mulf %145, %147 : vector<2x24xf32>
    %151 = arith.addf %149, %150 : vector<2x24xf32>
    %152 = math.tanh %151 : vector<2x24xf32>
    %153 = arith.mulf %148, %152 : vector<2x24xf32>
    %154 = vector.extract_strided_slice %11 {offsets = [14, 0], sizes = [2, 96], strides = [1, 1]} : vector<16x96xf32> to vector<2x96xf32>
    %cst_28 = arith.constant dense<0.000000e+00> : vector<2x96xf32>
    %155 = tpu.matmul %153, %12, %cst_28 {dimension_numbers = #tpu.dot_dimension_numbers<[1], [0], [0], [1], [0, 0, 1, 1], [], []>} : vector<2x24xf32>, vector<24x96xf32>, vector<2x96xf32> -> vector<2x96xf32>
    %156 = arith.addf %154, %155 : vector<2x96xf32>
    %157 = math.tanh %156 : vector<2x96xf32>
    %158 = arith.negf %156 : vector<2x96xf32>
    %159 = math.exp %158 : vector<2x96xf32>
    %cst_29 = arith.constant 1.000000e+00 : f32
    %160 = vector.broadcast %cst_29 : f32 to vector<2x96xf32>
    %161 = arith.addf %160, %159 : vector<2x96xf32>
    %162 = arith.divf %160, %161 : vector<2x96xf32>
    %163 = arith.select %18, %157, %162 : vector<2x96xi1>, vector<2x96xf32>
    %164 = vector.extract_strided_slice %163 {offsets = [0, 0], sizes = [2, 24], strides = [1, 1]} : vector<2x96xf32> to vector<2x24xf32>
    %165 = vector.extract_strided_slice %163 {offsets = [0, 24], sizes = [2, 24], strides = [1, 1]} : vector<2x96xf32> to vector<2x24xf32>
    %166 = vector.extract_strided_slice %163 {offsets = [0, 48], sizes = [2, 24], strides = [1, 1]} : vector<2x96xf32> to vector<2x24xf32>
    %167 = vector.extract_strided_slice %163 {offsets = [0, 72], sizes = [2, 24], strides = [1, 1]} : vector<2x96xf32> to vector<2x24xf32>
    %168 = arith.mulf %165, %151 : vector<2x24xf32>
    %169 = arith.mulf %164, %166 : vector<2x24xf32>
    %170 = arith.addf %168, %169 : vector<2x24xf32>
    %171 = math.tanh %170 : vector<2x24xf32>
    %172 = arith.mulf %167, %171 : vector<2x24xf32>
    %173 = tpu.concatenate %39, %58, %77, %96, %115, %134, %153, %172 in 0 : vector<2x24xf32>, vector<2x24xf32>, vector<2x24xf32>, vector<2x24xf32>, vector<2x24xf32>, vector<2x24xf32>, vector<2x24xf32>, vector<2x24xf32> -> vector<16x24xf32>
    %c0_30 = arith.constant 0 : index
    %c0_31 = arith.constant 0 : index
    %174 = vector.load %arg7[%c0_30, %c0_31] : memref<24x128xf32, #tpu.memory_space<vmem>>, vector<24x128xf32>
    %cst_32 = arith.constant dense<0.000000e+00> : vector<16x128xf32>
    %175 = tpu.matmul %173, %174, %cst_32 {dimension_numbers = #tpu.dot_dimension_numbers<[1], [0], [0], [1], [0, 0, 1, 1], [], []>} : vector<16x24xf32>, vector<24x128xf32>, vector<16x128xf32> -> vector<16x128xf32>
    %c0_33 = arith.constant 0 : index
    %c0_34 = arith.constant 0 : index
    %176 = vector.load %arg8[%c0_33, %c0_34] : memref<1x128xf32, #tpu.memory_space<vmem>>, vector<1x128xf32>
    %177 = vector.broadcast %176 : vector<1x128xf32> to vector<16x128xf32>
    %178 = arith.addf %175, %177 : vector<16x128xf32>
    %c0_35 = arith.constant 0 : index
    %c0_36 = arith.constant 0 : index
    %179 = vector.load %arg9[%c0_35, %c0_36] : memref<16x128xf32, #tpu.memory_space<vmem>>, vector<16x128xf32>
    tpu.vector_store %arg9[%c0_35, %c0_36], %178 {strides = array<i32>} : memref<16x128xf32, #tpu.memory_space<vmem>>, vector<16x128xf32>,
    return
  }
  func.func @transform_0(%arg0: i32) -> (i32, i32) {
    %c0_i32 = arith.constant 0 : i32
    %c0_i32_0 = arith.constant 0 : i32
    %c0_i32_1 = arith.constant 0 : i32
    return %c0_i32, %c0_i32_0 : i32, i32
  }
  func.func @transform_1(%arg0: i32) -> (i32, i32) {
    %c0_i32 = arith.constant 0 : i32
    %c0_i32_0 = arith.constant 0 : i32
    %c0_i32_1 = arith.constant 0 : i32
    return %c0_i32, %c0_i32_0 : i32, i32
  }
  func.func @transform_2(%arg0: i32) -> (i32, i32) {
    %c0_i32 = arith.constant 0 : i32
    %c0_i32_0 = arith.constant 0 : i32
    %c0_i32_1 = arith.constant 0 : i32
    return %c0_i32, %c0_i32_0 : i32, i32
  }
  func.func @transform_3(%arg0: i32) -> (i32, i32) {
    %c0_i32 = arith.constant 0 : i32
    %c0_i32_0 = arith.constant 0 : i32
    %c0_i32_1 = arith.constant 0 : i32
    return %c0_i32, %c0_i32_0 : i32, i32
  }
  func.func @transform_4(%arg0: i32) -> (i32, i32) {
    %c0_i32 = arith.constant 0 : i32
    %c0_i32_0 = arith.constant 0 : i32
    %c0_i32_1 = arith.constant 0 : i32
    return %c0_i32, %c0_i32_0 : i32, i32
  }
  func.func @transform_5(%arg0: i32) -> (i32, i32) {
    %c0_i32 = arith.constant 0 : i32
    %c0_i32_0 = arith.constant 0 : i32
    %c0_i32_1 = arith.constant 0 : i32
    return %c0_i32, %c0_i32_0 : i32, i32
  }
  func.func @transform_6(%arg0: i32) -> (i32, i32) {
    %c0_i32 = arith.constant 0 : i32
    %c0_i32_0 = arith.constant 0 : i32
    %c0_i32_1 = arith.constant 0 : i32
    return %c0_i32, %c0_i32_0 : i32, i32
  }
  func.func @transform_7(%arg0: i32) -> (i32, i32) {
    %c0_i32 = arith.constant 0 : i32
    %c0_i32_0 = arith.constant 0 : i32
    %c0_i32_1 = arith.constant 0 : i32
    return %c0_i32, %c0_i32_0 : i32, i32
  }
  func.func @transform_8(%arg0: i32) -> (i32, i32) {
    %c0_i32 = arith.constant 0 : i32
    %c0_i32_0 = arith.constant 0 : i32
    %c0_i32_1 = arith.constant 0 : i32
    return %c0_i32, %c0_i32_0 : i32, i32
  }
}

</mosaic_0001>

<llo_original>
// kernel: tpu_custom_call.1
$region0: #{tpu_custom_call.1}
  #allocation0 [shape = 'u32[]', space=smem, size = 0x4, offset = 0x4, fixed_abs, tag = 'smem constant byte address 0x4 - core index']
  #allocation1 [shape = 'u32[144,128]{1,0:T(1,128)}', space=vmem, size = 0x12000, scoped, tag = 'internal scratch']
  %s0 = inlined_call_operand.hbm [shape: f32[16,30], index: 0, kind: input, shape index: {}]
  %s1 = inlined_call_operand.vmem [shape: f32[30,24], index: 1, kind: input, shape index: {}]
  %s2 = inlined_call_operand.vmem [shape: f32[1,24], index: 2, kind: input, shape index: {}]
  %s3 = inlined_call_operand.vmem [shape: f32[24,96], index: 3, kind: input, shape index: {}]
  %s4 = inlined_call_operand.vmem [shape: f32[1,96], index: 4, kind: input, shape index: {}]
  %s5 = inlined_call_operand.vmem [shape: f32[24,96], index: 5, kind: input, shape index: {}]
  %s6 = inlined_call_operand.hbm [shape: f32[24,128], index: 6, kind: input, shape index: {}]
  %s7 = inlined_call_operand.vmem [shape: f32[1,128], index: 7, kind: input, shape index: {}]
  %s8 = inlined_call_operand.hbm [shape: f32[16,128], index: 8, kind: output, shape index: {}]
  %s9 = sld [smem:[#allocation0]]
  $region50: #{tpu_custom_call.1} parent=0
    _
  %s11 = ssub.s32 1, %s9
  %s12 = scalar_select 0, %s11, %s9
  $region1: #{tpu_custom_call.1} parent=0
    #allocation2 [shape = 'u8[8192]{0}', space=vmem, size = 0x2000, scoped, tag = 'input window, operand 0, single buffered']
    #allocation3 [shape = 's32[1]{0}', space=sflag, size = 0x4, scoped, tag = 'scoped memory for tpu_custom_call.1']
    #allocation4 [shape = 's32[1]{0}', space=sflag, size = 0x4, scoped, tag = 'scoped memory for tpu_custom_call.1']
    #allocation5 [shape = 'u8[12288]{0}', space=vmem, size = 0x3000, scoped, tag = 'input window, operand 6, single buffered']
    #allocation6 [shape = 's32[1]{0}', space=sflag, size = 0x4, scoped, tag = 'scoped memory for tpu_custom_call.1']
    #allocation7 [shape = 'u8[8192]{0}', space=vmem, size = 0x2000, scoped, tag = 'output window, operand 0, single buffered']
    %13 = vsyncpa [#allocation3], 0
    %14 = vsyncpa [#allocation6], 0
    %15 = vsyncpa [#allocation4], 0
    // Predicated region
    $region2: #{tpu_custom_call.1} parent=1 // pred_check
      _
    $region3: #{tpu_custom_call.1} parent=1 // pred_check_branch
      %17 = sbr.rel (0) target = $region5
    $region4: #{tpu_custom_call.1} parent=1 // pred_region
      %s19 = ssub.s32 256, 256
      %20 = vsyncadd [#allocation3], %s19
      %s21 = sshll.u32 [#allocation2], 4
      %s22 = int_to_ptr.vmem [resolvable:$true] %s21
      %27 = dma.hbm_to_vmem [thread:$0]  %s0, 256, %s22, [#allocation3], 128, 128, 8
    $region5: #{tpu_custom_call.1} parent=1 // pred_fallthru
      _
    // Predicated region
    $region6: #{tpu_custom_call.1} parent=1 // pred_check
      _
    $region7: #{tpu_custom_call.1} parent=1 // pred_check_branch
      %29 = sbr.rel (0) target = $region9
    $region8: #{tpu_custom_call.1} parent=1 // pred_region
      _
    $region9: #{tpu_custom_call.1} parent=1 // pred_fallthru
      _
    // Predicated region
    $region10: #{tpu_custom_call.1} parent=1 // pred_check
      _
    $region11: #{tpu_custom_call.1} parent=1 // pred_check_branch
      %31 = sbr.rel (0) target = $region13
    $region12: #{tpu_custom_call.1} parent=1 // pred_region
      _
    $region13: #{tpu_custom_call.1} parent=1 // pred_fallthru
      _
    // Predicated region
    $region14: #{tpu_custom_call.1} parent=1 // pred_check
      _
    $region15: #{tpu_custom_call.1} parent=1 // pred_check_branch
      %33 = sbr.rel (0) target = $region17
    $region16: #{tpu_custom_call.1} parent=1 // pred_region
      _
    $region17: #{tpu_custom_call.1} parent=1 // pred_fallthru
      _
    // Predicated region
    $region18: #{tpu_custom_call.1} parent=1 // pred_check
      _
    $region19: #{tpu_custom_call.1} parent=1 // pred_check_branch
      %35 = sbr.rel (0) target = $region21
    $region20: #{tpu_custom_call.1} parent=1 // pred_region
      _
    $region21: #{tpu_custom_call.1} parent=1 // pred_fallthru
      _
    // Predicated region
    $region22: #{tpu_custom_call.1} parent=1 // pred_check
      _
    $region23: #{tpu_custom_call.1} parent=1 // pred_check_branch
      %37 = sbr.rel (0) target = $region25
    $region24: #{tpu_custom_call.1} parent=1 // pred_region
      _
    $region25: #{tpu_custom_call.1} parent=1 // pred_fallthru
      _
    // Predicated region
    $region26: #{tpu_custom_call.1} parent=1 // pred_check
      _
    $region27: #{tpu_custom_call.1} parent=1 // pred_check_branch
      %39 = sbr.rel (0) target = $region29
    $region28: #{tpu_custom_call.1} parent=1 // pred_region
      %s41 = ssub.s32 384, 384
      %42 = vsyncadd [#allocation6], %s41
      %s43 = sshll.u32 [#allocation5], 4
      %s44 = int_to_ptr.vmem [resolvable:$true] %s43
      %49 = dma.hbm_to_vmem [thread:$0]  %s6, 384, %s44, [#allocation6], 128, 128, 8
    $region29: #{tpu_custom_call.1} parent=1 // pred_fallthru
      _
    // Predicated region
    $region30: #{tpu_custom_call.1} parent=1 // pred_check
      _
    $region31: #{tpu_custom_call.1} parent=1 // pred_check_branch
      %51 = sbr.rel (0) target = $region33
    $region32: #{tpu_custom_call.1} parent=1 // pred_region
      _
    $region33: #{tpu_custom_call.1} parent=1 // pred_fallthru
      _
    // Predicated region
    $region34: #{tpu_custom_call.1} parent=1 // pred_check
      _
    $region35: #{tpu_custom_call.1} parent=1 // pred_check_branch
      %53 = sbr.rel (0) target = $region37
    $region36: #{tpu_custom_call.1} parent=1 // pred_region
      %54 = dma.done [#allocation3], 256
    $region37: #{tpu_custom_call.1} parent=1 // pred_fallthru
      _
    // Predicated region
    $region38: #{tpu_custom_call.1} parent=1 // pred_check
      _
    $region39: #{tpu_custom_call.1} parent=1 // pred_check_branch
      %56 = sbr.rel (0) target = $region41
    $region40: #{tpu_custom_call.1} parent=1 // pred_region
      %57 = dma.done [#allocation6], 384
    $region41: #{tpu_custom_call.1} parent=1 // pred_fallthru
      _
    %v58 = vld [vmem:[#allocation2] sm:$0xff]
    %v59 = vld [vmem:[#allocation2 + $0x8] sm:$0xff]
    %v60 = vld [vmem:[%s1] sm:$0xff]
    %v61 = vld [vmem:[%s1 + $0x8] sm:$0xff]
    %v62 = vld [vmem:[%s1 + $0x10] sm:$0xff]
    %v63 = vld [vmem:[%s1 + $0x18] sm:$0x3f]
    %v64 = vld [vmem:[%s2] sm:$0x1]
    %v66 = vlaneseq
    %v67 = vshrl.u32 %v66, 7
    %v68 = vsub.s32 0, %v67
    %v69 = vrot.slane %v64, %v68
    %vm71 = vcmask 244736
    %v73 = vsel %vm71, %v58, 0
    %v76 = vsel %vm71, %v59, 0
    %vm78 = vcmask 1045504
    %v80 = vsel %vm78, %v63, 0
    %82 = vmatprep.subr.mxu0 0.0
    %83 = vmatpush1.msra.mxu0 0.0
    %84 = vmatprep.subr.mxu0 0.0
    %85 = vmatpush1.msra.mxu0 0.0
    %86 = vmatprep.subr.mxu0 0.0
    %87 = vmatpush1.msra.mxu0 0.0
    %88 = vmatprep.subr.mxu0 0.0
    %89 = vmatpush1.msra.mxu0 0.0
    %90 = vmatprep.subr.mxu0 0.0
    %91 = vmatpush1.msra.mxu0 0.0
    %92 = vmatprep.subr.mxu0 0.0
    %93 = vmatpush1.msra.mxu0 0.0
    %94 = vmatprep.subr.mxu0 0.0
    %95 = vmatpush1.msra.mxu0 0.0
    %96 = vmatprep.subr.mxu0 0.0
    %97 = vmatpush1.msra.mxu0 0.0
    %98 = vmatprep.subr.mxu0 0.0
    %99 = vmatpush1.msra.mxu0 0.0
    %100 = vmatprep.subr.mxu0 0.0
    %101 = vmatpush1.msra.mxu0 0.0
    %102 = vmatprep.subr.mxu0 0.0
    %103 = vmatpush1.msra.mxu0 0.0
    %104 = vmatprep.subr.mxu0 0.0
    %105 = vmatpush1.msra.mxu0 0.0
    %106 = vmatprep.subr.mxu0 0.0
    %107 = vmatpush1.msra.mxu0 %v80
    %108 = vmatprep.subr.mxu0 0.0
    %109 = vmatpush1.msra.mxu0 %v62
    %110 = vmatprep.subr.mxu0 0.0
    %111 = vmatpush1.msra.mxu0 %v61
    %112 = vmatprep.subr.mxu0 0.0
    %113 = vmatpush1.msra.mxu0 %v60
    %114 = vmatprep.subr.mxu0 0.0
    %115 = vmatpush2.msra.mxu0 0.0
    %116 = vmatprep.subr.mxu0 0.0
    %117 = vmatpush2.msra.mxu0 0.0
    %118 = vmatprep.subr.mxu0 0.0
    %119 = vmatpush2.msra.mxu0 0.0
    %120 = vmatprep.subr.mxu0 0.0
    %121 = vmatpush2.msra.mxu0 0.0
    %122 = vmatprep.subr.mxu0 0.0
    %123 = vmatpush2.msra.mxu0 0.0
    %124 = vmatprep.subr.mxu0 0.0
    %125 = vmatpush2.msra.mxu0 0.0
    %126 = vmatprep.subr.mxu0 0.0
    %127 = vmatpush2.msra.mxu0 0.0
    %128 = vmatprep.subr.mxu0 0.0
    %129 = vmatpush2.msra.mxu0 0.0
    %130 = vmatprep.subr.mxu0 0.0
    %131 = vmatpush2.msra.mxu0 0.0
    %132 = vmatprep.subr.mxu0 0.0
    %133 = vmatpush2.msra.mxu0 0.0
    %134 = vmatprep.subr.mxu0 0.0
    %135 = vmatpush2.msra.mxu0 0.0
    %136 = vmatprep.subr.mxu0 0.0
    %137 = vmatpush2.msra.mxu0 0.0
    %138 = vmatprep.subr.mxu0 0.0
    %139 = vmatpush2.msra.mxu0 0.0
    %140 = vmatprep.subr.mxu0 0.0
    %141 = vmatpush2.msra.mxu0 0.0
    %142 = vmatprep.subr.mxu0 0.0
    %143 = vmatpush2.msra.mxu0 0.0
    %144 = vmatprep.subr.mxu0 0.0
    %145 = vmatpush2.msra.mxu0 0.0
    %146 = vmatprep.mubr.f32.mxu0 0.0
    %147 = vmatmul.mubr.f32.gmra.mxu0 %v73
    %v148 = vpop.f32.mrf.mxu0
    %v149 = vadd.f32 %v69, %v148
    %v150 = vpop.f32.mrf.mxu0
    %151 = vmatprep.mubr.f32.mxu0 0.0
    %152 = vmatmul.mubr.f32.gmra.mxu0 %v76
    %v153 = vpop.f32.mrf.mxu0
    %v154 = vadd.f32 %v69, %v153
    %v155 = vpop.f32.mrf.mxu0
    %156 = vdwg.mxu0
    %v157 = vtanh.pop %v149
    %v158 = vtanh.pop %v154
    %v159 = vld [vmem:[%s3] sm:$0xff]
    %v160 = vld [vmem:[%s3 + $0x8] sm:$0xff]
    %v161 = vld [vmem:[%s3 + $0x10] sm:$0xff]
    %v162 = vld [vmem:[%s4] sm:$0x1]
    %v164 = vlaneseq
    %v165 = vshrl.u32 %v164, 7
    %v166 = vsub.s32 0, %v165
    %v167 = vrot.slane %v162, %v166
    %vm169 = vcmask 195584
    %v171 = vsel %vm169, %v157, 0
    %v174 = vsel %vm169, %v158, 0
    %176 = vmatprep.subr.mxu0 0.0
    %177 = vmatpush1.msra.mxu0 0.0
    %178 = vmatprep.subr.mxu0 0.0
    %179 = vmatpush1.msra.mxu0 0.0
    %180 = vmatprep.subr.mxu0 0.0
    %181 = vmatpush1.msra.mxu0 0.0
    %182 = vmatprep.subr.mxu0 0.0
    %183 = vmatpush1.msra.mxu0 0.0
    %184 = vmatprep.subr.mxu0 0.0
    %185 = vmatpush1.msra.mxu0 0.0
    %186 = vmatprep.subr.mxu0 0.0
    %187 = vmatpush1.msra.mxu0 0.0
    %188 = vmatprep.subr.mxu0 0.0
    %189 = vmatpush1.msra.mxu0 0.0
    %190 = vmatprep.subr.mxu0 0.0
    %191 = vmatpush1.msra.mxu0 0.0
    %192 = vmatprep.subr.mxu0 0.0
    %193 = vmatpush1.msra.mxu0 0.0
    %194 = vmatprep.subr.mxu0 0.0
    %195 = vmatpush1.msra.mxu0 0.0
    %196 = vmatprep.subr.mxu0 0.0
    %197 = vmatpush1.msra.mxu0 0.0
    %198 = vmatprep.subr.mxu0 0.0
    %199 = vmatpush1.msra.mxu0 0.0
    %200 = vmatprep.subr.mxu0 0.0
    %201 = vmatpush1.msra.mxu0 0.0
    %202 = vmatprep.subr.mxu0 0.0
    %203 = vmatpush1.msra.mxu0 %v161
    %204 = vmatprep.subr.mxu0 0.0
    %205 = vmatpush1.msra.mxu0 %v160
    %206 = vmatprep.subr.mxu0 0.0
    %207 = vmatpush1.msra.mxu0 %v159
    %208 = vmatprep.subr.mxu0 0.0
    %209 = vmatpush2.msra.mxu0 0.0
    %210 = vmatprep.subr.mxu0 0.0
    %211 = vmatpush2.msra.mxu0 0.0
    %212 = vmatprep.subr.mxu0 0.0
    %213 = vmatpush2.msra.mxu0 0.0
    %214 = vmatprep.subr.mxu0 0.0
    %215 = vmatpush2.msra.mxu0 0.0
    %216 = vmatprep.subr.mxu0 0.0
    %217 = vmatpush2.msra.mxu0 0.0
    %218 = vmatprep.subr.mxu0 0.0
    %219 = vmatpush2.msra.mxu0 0.0
    %220 = vmatprep.subr.mxu0 0.0
    %221 = vmatpush2.msra.mxu0 0.0
    %222 = vmatprep.subr.mxu0 0.0
    %223 = vmatpush2.msra.mxu0 0.0
    %224 = vmatprep.subr.mxu0 0.0
    %225 = vmatpush2.msra.mxu0 0.0
    %226 = vmatprep.subr.mxu0 0.0
    %227 = vmatpush2.msra.mxu0 0.0
    %228 = vmatprep.subr.mxu0 0.0
    %229 = vmatpush2.msra.mxu0 0.0
    %230 = vmatprep.subr.mxu0 0.0
    %231 = vmatpush2.msra.mxu0 0.0
    %232 = vmatprep.subr.mxu0 0.0
    %233 = vmatpush2.msra.mxu0 0.0
    %234 = vmatprep.subr.mxu0 0.0
    %235 = vmatpush2.msra.mxu0 0.0
    %236 = vmatprep.subr.mxu0 0.0
    %237 = vmatpush2.msra.mxu0 0.0
    %238 = vmatprep.subr.mxu0 0.0
    %239 = vmatpush2.msra.mxu0 0.0
    %240 = vmatprep.mubr.f32.mxu0 0.0
    %241 = vmatmul.mubr.f32.gmra.mxu0 %v171
    %v242 = vpop.f32.mrf.mxu0
    %v243 = vadd.f32 %v167, %v242
    %v244 = vpop.f32.mrf.mxu0
    %245 = vmatprep.mubr.f32.mxu0 0.0
    %246 = vmatmul.mubr.f32.gmra.mxu0 %v174
    %v247 = vpop.f32.mrf.mxu0
    %v248 = vadd.f32 %v167, %v247
    %v249 = vpop.f32.mrf.mxu0
    %250 = vdwg.mxu0
    %v251 = vld [vmem:[%s5] sm:$0xff]
    %v252 = vld [vmem:[%s5 + $0x8] sm:$0xff]
    %v253 = vld [vmem:[%s5 + $0x10] sm:$0xff]
    %v254 = vlaneseq
    %v255 = vand.u32 %v254, 127
    %vm256 = vcmp.ge.s32.totalorder %v255, 48
    %vm257 = vcmp.lt.s32.totalorder %v255, 72
    %vm258 = vmand %vm256, %vm257
    %v260 = vsel %vm169, 0.0, 0
    %262 = vmatprep.subr.mxu0 0.0
    %263 = vmatpush1.msra.mxu0 0.0
    %264 = vmatprep.subr.mxu0 0.0
    %265 = vmatpush1.msra.mxu0 0.0
    %266 = vmatprep.subr.mxu0 0.0
    %267 = vmatpush1.msra.mxu0 0.0
    %268 = vmatprep.subr.mxu0 0.0
    %269 = vmatpush1.msra.mxu0 0.0
    %270 = vmatprep.subr.mxu0 0.0
    %271 = vmatpush1.msra.mxu0 0.0
    %272 = vmatprep.subr.mxu0 0.0
    %273 = vmatpush1.msra.mxu0 0.0
    %274 = vmatprep.subr.mxu0 0.0
    %275 = vmatpush1.msra.mxu0 0.0
    %276 = vmatprep.subr.mxu0 0.0
    %277 = vmatpush1.msra.mxu0 0.0
    %278 = vmatprep.subr.mxu0 0.0
    %279 = vmatpush1.msra.mxu0 0.0
    %280 = vmatprep.subr.mxu0 0.0
    %281 = vmatpush1.msra.mxu0 0.0
    %282 = vmatprep.subr.mxu0 0.0
    %283 = vmatpush1.msra.mxu0 0.0
    %284 = vmatprep.subr.mxu0 0.0
    %285 = vmatpush1.msra.mxu0 0.0
    %286 = vmatprep.subr.mxu0 0.0
    %287 = vmatpush1.msra.mxu0 0.0
    %288 = vmatprep.subr.mxu0 0.0
    %289 = vmatpush1.msra.mxu0 %v253
    %290 = vmatprep.subr.mxu0 0.0
    %291 = vmatpush1.msra.mxu0 %v252
    %292 = vmatprep.subr.mxu0 0.0
    %293 = vmatpush1.msra.mxu0 %v251
    %294 = vmatprep.subr.mxu0 0.0
    %295 = vmatpush2.msra.mxu0 0.0
    %296 = vmatprep.subr.mxu0 0.0
    %297 = vmatpush2.msra.mxu0 0.0
    %298 = vmatprep.subr.mxu0 0.0
    %299 = vmatpush2.msra.mxu0 0.0
    %300 = vmatprep.subr.mxu0 0.0
    %301 = vmatpush2.msra.mxu0 0.0
    %302 = vmatprep.subr.mxu0 0.0
    %303 = vmatpush2.msra.mxu0 0.0
    %304 = vmatprep.subr.mxu0 0.0
    %305 = vmatpush2.msra.mxu0 0.0
    %306 = vmatprep.subr.mxu0 0.0
    %307 = vmatpush2.msra.mxu0 0.0
    %308 = vmatprep.subr.mxu0 0.0
    %309 = vmatpush2.msra.mxu0 0.0
    %310 = vmatprep.subr.mxu0 0.0
    %311 = vmatpush2.msra.mxu0 0.0
    %312 = vmatprep.subr.mxu0 0.0
    %313 = vmatpush2.msra.mxu0 0.0
    %314 = vmatprep.subr.mxu0 0.0
    %315 = vmatpush2.msra.mxu0 0.0
    %316 = vmatprep.subr.mxu0 0.0
    %317 = vmatpush2.msra.mxu0 0.0
    %318 = vmatprep.subr.mxu0 0.0
    %319 = vmatpush2.msra.mxu0 0.0
    %320 = vmatprep.subr.mxu0 0.0
    %321 = vmatpush2.msra.mxu0 0.0
    %322 = vmatprep.subr.mxu0 0.0
    %323 = vmatpush2.msra.mxu0 0.0
    %324 = vmatprep.subr.mxu0 0.0
    %325 = vmatpush2.msra.mxu0 0.0
    %326 = vmatprep.mubr.f32.mxu0 0.0
    %327 = vmatmul.mubr.f32.gmra.mxu0 %v260
    %v328 = vpop.f32.mrf.mxu0
    %v329 = vadd.f32 0.0, %v328
    %v330 = vpop.f32.mrf.mxu0
    %331 = vdwg.mxu0
    %v332 = vadd.f32 %v243, %v329
    %v333 = vtanh.pop %v332
    %v334 = vxor.u32 %v332, 2147483648
    %v335 = vmul.f32 %v334, 1.442695
    %v336 = vpow.pop %v335
    %v337 = vadd.f32 %v336, 1.0
    %v338 = vrcp.pop %v337
    %v339 = vmul.f32 1.0, %v338
    %v340 = vsel %vm258, %v333, %v339
    %v341 = vmul.f32 %v340, 0.0
    %343 = vrot.lane.b32.xlu0 %v340, 80
    %v344 = vpop.permute.xlu0 %343
    %v346 = vmul.f32 %v340, %v344
    %348 = vrot.lane.b32.xlu0 %v346, 24
    %v349 = vpop.permute.xlu0 %348
    %v351 = vadd.f32 %v341, %v349
    %v352 = vtanh.pop %v351
    %354 = vrot.lane.b32.xlu0 %v352, 48
    %v355 = vpop.permute.xlu0 %354
    %v357 = vmul.f32 %v340, %v355
    %359 = vrot.lane.b32.xlu0 %v357, 56
    %v360 = vpop.permute.xlu0 %359
    %v361 = vsel %vm169, %v360, 0
    %363 = vmatprep.subr.mxu0 0.0
    %364 = vmatpush1.msra.mxu0 0.0
    %365 = vmatprep.subr.mxu0 0.0
    %366 = vmatpush1.msra.mxu0 0.0
    %367 = vmatprep.subr.mxu0 0.0
    %368 = vmatpush1.msra.mxu0 0.0
    %369 = vmatprep.subr.mxu0 0.0
    %370 = vmatpush1.msra.mxu0 0.0
    %371 = vmatprep.subr.mxu0 0.0
    %372 = vmatpush1.msra.mxu0 0.0
    %373 = vmatprep.subr.mxu0 0.0
    %374 = vmatpush1.msra.mxu0 0.0
    %375 = vmatprep.subr.mxu0 0.0
    %376 = vmatpush1.msra.mxu0 0.0
    %377 = vmatprep.subr.mxu0 0.0
    %378 = vmatpush1.msra.mxu0 0.0
    %379 = vmatprep.subr.mxu0 0.0
    %380 = vmatpush1.msra.mxu0 0.0
    %381 = vmatprep.subr.mxu0 0.0
    %382 = vmatpush1.msra.mxu0 0.0
    %383 = vmatprep.subr.mxu0 0.0
    %384 = vmatpush1.msra.mxu0 0.0
    %385 = vmatprep.subr.mxu0 0.0
    %386 = vmatpush1.msra.mxu0 0.0
    %387 = vmatprep.subr.mxu0 0.0
    %388 = vmatpush1.msra.mxu0 0.0
    %389 = vmatprep.subr.mxu0 0.0
    %390 = vmatpush1.msra.mxu0 %v253
    %391 = vmatprep.subr.mxu0 0.0
    %392 = vmatpush1.msra.mxu0 %v252
    %393 = vmatprep.subr.mxu0 0.0
    %394 = vmatpush1.msra.mxu0 %v251
    %395 = vmatprep.subr.mxu0 0.0
    %396 = vmatpush2.msra.mxu0 0.0
    %397 = vmatprep.subr.mxu0 0.0
    %398 = vmatpush2.msra.mxu0 0.0
    %399 = vmatprep.subr.mxu0 0.0
    %400 = vmatpush2.msra.mxu0 0.0
    %401 = vmatprep.subr.mxu0 0.0
    %402 = vmatpush2.msra.mxu0 0.0
    %403 = vmatprep.subr.mxu0 0.0
    %404 = vmatpush2.msra.mxu0 0.0
    %405 = vmatprep.subr.mxu0 0.0
    %406 = vmatpush2.msra.mxu0 0.0
    %407 = vmatprep.subr.mxu0 0.0
    %408 = vmatpush2.msra.mxu0 0.0
    %409 = vmatprep.subr.mxu0 0.0
    %410 = vmatpush2.msra.mxu0 0.0
    %411 = vmatprep.subr.mxu0 0.0
    %412 = vmatpush2.msra.mxu0 0.0
    %413 = vmatprep.subr.mxu0 0.0
    %414 = vmatpush2.msra.mxu0 0.0
    %415 = vmatprep.subr.mxu0 0.0
    %416 = vmatpush2.msra.mxu0 0.0
    %417 = vmatprep.subr.mxu0 0.0
    %418 = vmatpush2.msra.mxu0 0.0
    %419 = vmatprep.subr.mxu0 0.0
    %420 = vmatpush2.msra.mxu0 0.0
    %421 = vmatprep.subr.mxu0 0.0
    %422 = vmatpush2.msra.mxu0 0.0
    %423 = vmatprep.subr.mxu0 0.0
    %424 = vmatpush2.msra.mxu0 0.0
    %425 = vmatprep.subr.mxu0 0.0
    %426 = vmatpush2.msra.mxu0 0.0
    %427 = vmatprep.mubr.f32.mxu0 0.0
    %428 = vmatmul.mubr.f32.gmra.mxu0 %v361
    %v429 = vpop.f32.mrf.mxu0
    %v430 = vadd.f32 0.0, %v429
    %v431 = vpop.f32.mrf.mxu0
    %432 = vdwg.mxu0
    %v434 = vrot.slane %v430, 6
    %v436 = vadd.f32 %v243, %v434
    %v437 = vtanh.pop %v436
    %v438 = vxor.u32 %v436, 2147483648
    %v439 = vmul.f32 %v438, 1.442695
    %v440 = vpow.pop %v439
    %v441 = vadd.f32 %v440, 1.0
    %v442 = vrcp.pop %v441
    %v443 = vmul.f32 1.0, %v442
    %v444 = vsel %vm258, %v437, %v443
    %v446 = vrot.slane %v351, 6
    %v448 = vmul.f32 %v444, %v446
    %450 = vrot.lane.b32.xlu0 %v444, 80
    %v451 = vpop.permute.xlu0 %450
    %v453 = vmul.f32 %v444, %v451
    %455 = vrot.lane.b32.xlu0 %v453, 24
    %v456 = vpop.permute.xlu0 %455
    %v458 = vadd.f32 %v448, %v456
    %v459 = vtanh.pop %v458
    %461 = vrot.lane.b32.xlu0 %v459, 48
    %v462 = vpop.permute.xlu0 %461
    %v464 = vmul.f32 %v444, %v462
    %v466 = vrot.slane %v464, 2
    %467 = vrot.lane.b32.xlu0 %v466, 56
    %v468 = vpop.permute.xlu0 %467
    %v469 = vsel %vm169, %v468, 0
    %471 = vmatprep.subr.mxu0 0.0
    %472 = vmatpush1.msra.mxu0 0.0
    %473 = vmatprep.subr.mxu0 0.0
    %474 = vmatpush1.msra.mxu0 0.0
    %475 = vmatprep.subr.mxu0 0.0
    %476 = vmatpush1.msra.mxu0 0.0
    %477 = vmatprep.subr.mxu0 0.0
    %478 = vmatpush1.msra.mxu0 0.0
    %479 = vmatprep.subr.mxu0 0.0
    %480 = vmatpush1.msra.mxu0 0.0
    %481 = vmatprep.subr.mxu0 0.0
    %482 = vmatpush1.msra.mxu0 0.0
    %483 = vmatprep.subr.mxu0 0.0
    %484 = vmatpush1.msra.mxu0 0.0
    %485 = vmatprep.subr.mxu0 0.0
    %486 = vmatpush1.msra.mxu0 0.0
    %487 = vmatprep.subr.mxu0 0.0
    %488 = vmatpush1.msra.mxu0 0.0
    %489 = vmatprep.subr.mxu0 0.0
    %490 = vmatpush1.msra.mxu0 0.0
    %491 = vmatprep.subr.mxu0 0.0
    %492 = vmatpush1.msra.mxu0 0.0
    %493 = vmatprep.subr.mxu0 0.0
    %494 = vmatpush1.msra.mxu0 0.0
    %495 = vmatprep.subr.mxu0 0.0
    %496 = vmatpush1.msra.mxu0 0.0
    %497 = vmatprep.subr.mxu0 0.0
    %498 = vmatpush1.msra.mxu0 %v253
    %499 = vmatprep.subr.mxu0 0.0
    %500 = vmatpush1.msra.mxu0 %v252
    %501 = vmatprep.subr.mxu0 0.0
    %502 = vmatpush1.msra.mxu0 %v251
    %503 = vmatprep.subr.mxu0 0.0
    %504 = vmatpush2.msra.mxu0 0.0
    %505 = vmatprep.subr.mxu0 0.0
    %506 = vmatpush2.msra.mxu0 0.0
    %507 = vmatprep.subr.mxu0 0.0
    %508 = vmatpush2.msra.mxu0 0.0
    %509 = vmatprep.subr.mxu0 0.0
    %510 = vmatpush2.msra.mxu0 0.0
    %511 = vmatprep.subr.mxu0 0.0
    %512 = vmatpush2.msra.mxu0 0.0
    %513 = vmatprep.subr.mxu0 0.0
    %514 = vmatpush2.msra.mxu0 0.0
    %515 = vmatprep.subr.mxu0 0.0
    %516 = vmatpush2.msra.mxu0 0.0
    %517 = vmatprep.subr.mxu0 0.0
    %518 = vmatpush2.msra.mxu0 0.0
    %519 = vmatprep.subr.mxu0 0.0
    %520 = vmatpush2.msra.mxu0 0.0
    %521 = vmatprep.subr.mxu0 0.0
    %522 = vmatpush2.msra.mxu0 0.0
    %523 = vmatprep.subr.mxu0 0.0
    %524 = vmatpush2.msra.mxu0 0.0
    %525 = vmatprep.subr.mxu0 0.0
    %526 = vmatpush2.msra.mxu0 0.0
    %527 = vmatprep.subr.mxu0 0.0
    %528 = vmatpush2.msra.mxu0 0.0
    %529 = vmatprep.subr.mxu0 0.0
    %530 = vmatpush2.msra.mxu0 0.0
    %531 = vmatprep.subr.mxu0 0.0
    %532 = vmatpush2.msra.mxu0 0.0
    %533 = vmatprep.subr.mxu0 0.0
    %534 = vmatpush2.msra.mxu0 0.0
    %535 = vmatprep.mubr.f32.mxu0 0.0
    %536 = vmatmul.mubr.f32.gmra.mxu0 %v469
    %v537 = vpop.f32.mrf.mxu0
    %v538 = vadd.f32 0.0, %v537
    %v539 = vpop.f32.mrf.mxu0
    %540 = vdwg.mxu0
    %v542 = vrot.slane %v538, 4
    %v544 = vadd.f32 %v243, %v542
    %v545 = vtanh.pop %v544
    %v546 = vxor.u32 %v544, 2147483648
    %v547 = vmul.f32 %v546, 1.442695
    %v548 = vpow.pop %v547
    %v549 = vadd.f32 %v548, 1.0
    %v550 = vrcp.pop %v549
    %v551 = vmul.f32 1.0, %v550
    %v552 = vsel %vm258, %v545, %v551
    %v554 = vrot.slane %v458, 6
    %v556 = vmul.f32 %v552, %v554
    %558 = vrot.lane.b32.xlu0 %v552, 80
    %v559 = vpop.permute.xlu0 %558
    %v561 = vmul.f32 %v552, %v559
    %563 = vrot.lane.b32.xlu0 %v561, 24
    %v564 = vpop.permute.xlu0 %563
    %v566 = vadd.f32 %v556, %v564
    %v567 = vtanh.pop %v566
    %569 = vrot.lane.b32.xlu0 %v567, 48
    %v570 = vpop.permute.xlu0 %569
    %v572 = vmul.f32 %v552, %v570
    %v574 = vrot.slane %v572, 4
    %575 = vrot.lane.b32.xlu0 %v574, 56
    %v576 = vpop.permute.xlu0 %575
    %v577 = vsel %vm169, %v576, 0
    %579 = vmatprep.subr.mxu0 0.0
    %580 = vmatpush1.msra.mxu0 0.0
    %581 = vmatprep.subr.mxu0 0.0
    %582 = vmatpush1.msra.mxu0 0.0
    %583 = vmatprep.subr.mxu0 0.0
    %584 = vmatpush1.msra.mxu0 0.0
    %585 = vmatprep.subr.mxu0 0.0
    %586 = vmatpush1.msra.mxu0 0.0
    %587 = vmatprep.subr.mxu0 0.0
    %588 = vmatpush1.msra.mxu0 0.0
    %589 = vmatprep.subr.mxu0 0.0
    %590 = vmatpush1.msra.mxu0 0.0
    %591 = vmatprep.subr.mxu0 0.0
    %592 = vmatpush1.msra.mxu0 0.0
    %593 = vmatprep.subr.mxu0 0.0
    %594 = vmatpush1.msra.mxu0 0.0
    %595 = vmatprep.subr.mxu0 0.0
    %596 = vmatpush1.msra.mxu0 0.0
    %597 = vmatprep.subr.mxu0 0.0
    %598 = vmatpush1.msra.mxu0 0.0
    %599 = vmatprep.subr.mxu0 0.0
    %600 = vmatpush1.msra.mxu0 0.0
    %601 = vmatprep.subr.mxu0 0.0
    %602 = vmatpush1.msra.mxu0 0.0
    %603 = vmatprep.subr.mxu0 0.0
    %604 = vmatpush1.msra.mxu0 0.0
    %605 = vmatprep.subr.mxu0 0.0
    %606 = vmatpush1.msra.mxu0 %v253
    %607 = vmatprep.subr.mxu0 0.0
    %608 = vmatpush1.msra.mxu0 %v252
    %609 = vmatprep.subr.mxu0 0.0
    %610 = vmatpush1.msra.mxu0 %v251
    %611 = vmatprep.subr.mxu0 0.0
    %612 = vmatpush2.msra.mxu0 0.0
    %613 = vmatprep.subr.mxu0 0.0
    %614 = vmatpush2.msra.mxu0 0.0
    %615 = vmatprep.subr.mxu0 0.0
    %616 = vmatpush2.msra.mxu0 0.0
    %617 = vmatprep.subr.mxu0 0.0
    %618 = vmatpush2.msra.mxu0 0.0
    %619 = vmatprep.subr.mxu0 0.0
    %620 = vmatpush2.msra.mxu0 0.0
    %621 = vmatprep.subr.mxu0 0.0
    %622 = vmatpush2.msra.mxu0 0.0
    %623 = vmatprep.subr.mxu0 0.0
    %624 = vmatpush2.msra.mxu0 0.0
    %625 = vmatprep.subr.mxu0 0.0
    %626 = vmatpush2.msra.mxu0 0.0
    %627 = vmatprep.subr.mxu0 0.0
    %628 = vmatpush2.msra.mxu0 0.0
    %629 = vmatprep.subr.mxu0 0.0
    %630 = vmatpush2.msra.mxu0 0.0
    %631 = vmatprep.subr.mxu0 0.0
    %632 = vmatpush2.msra.mxu0 0.0
    %633 = vmatprep.subr.mxu0 0.0
    %634 = vmatpush2.msra.mxu0 0.0
    %635 = vmatprep.subr.mxu0 0.0
    %636 = vmatpush2.msra.mxu0 0.0
    %637 = vmatprep.subr.mxu0 0.0
    %638 = vmatpush2.msra.mxu0 0.0
    %639 = vmatprep.subr.mxu0 0.0
    %640 = vmatpush2.msra.mxu0 0.0
    %641 = vmatprep.subr.mxu0 0.0
    %642 = vmatpush2.msra.mxu0 0.0
    %643 = vmatprep.mubr.f32.mxu0 0.0
    %644 = vmatmul.mubr.f32.gmra.mxu0 %v577
    %v645 = vpop.f32.mrf.mxu0
    %v646 = vadd.f32 0.0, %v645
    %v647 = vpop.f32.mrf.mxu0
    %648 = vdwg.mxu0
    %v650 = vrot.slane %v646, 2
    %v652 = vadd.f32 %v243, %v650
    %v653 = vtanh.pop %v652
    %v654 = vxor.u32 %v652, 2147483648
    %v655 = vmul.f32 %v654, 1.442695
    %v656 = vpow.pop %v655
    %v657 = vadd.f32 %v656, 1.0
    %v658 = vrcp.pop %v657
    %v659 = vmul.f32 1.0, %v658
    %v660 = vsel %vm258, %v653, %v659
    %v662 = vrot.slane %v566, 6
    %v664 = vmul.f32 %v660, %v662
    %666 = vrot.lane.b32.xlu0 %v660, 80
    %v667 = vpop.permute.xlu0 %666
    %v669 = vmul.f32 %v660, %v667
    %671 = vrot.lane.b32.xlu0 %v669, 24
    %v672 = vpop.permute.xlu0 %671
    %v674 = vadd.f32 %v664, %v672
    %v675 = vtanh.pop %v674
    %677 = vrot.lane.b32.xlu0 %v675, 48
    %v678 = vpop.permute.xlu0 %677
    %v680 = vmul.f32 %v660, %v678
    %v682 = vrot.slane %v680, 6
    %683 = vrot.lane.b32.xlu0 %v682, 56
    %v684 = vpop.permute.xlu0 %683
    %v685 = vsel %vm169, %v684, 0
    %687 = vmatprep.subr.mxu0 0.0
    %688 = vmatpush1.msra.mxu0 0.0
    %689 = vmatprep.subr.mxu0 0.0
    %690 = vmatpush1.msra.mxu0 0.0
    %691 = vmatprep.subr.mxu0 0.0
    %692 = vmatpush1.msra.mxu0 0.0
    %693 = vmatprep.subr.mxu0 0.0
    %694 = vmatpush1.msra.mxu0 0.0
    %695 = vmatprep.subr.mxu0 0.0
    %696 = vmatpush1.msra.mxu0 0.0
    %697 = vmatprep.subr.mxu0 0.0
    %698 = vmatpush1.msra.mxu0 0.0
    %699 = vmatprep.subr.mxu0 0.0
    %700 = vmatpush1.msra.mxu0 0.0
    %701 = vmatprep.subr.mxu0 0.0
    %702 = vmatpush1.msra.mxu0 0.0
    %703 = vmatprep.subr.mxu0 0.0
    %704 = vmatpush1.msra.mxu0 0.0
    %705 = vmatprep.subr.mxu0 0.0
    %706 = vmatpush1.msra.mxu0 0.0
    %707 = vmatprep.subr.mxu0 0.0
    %708 = vmatpush1.msra.mxu0 0.0
    %709 = vmatprep.subr.mxu0 0.0
    %710 = vmatpush1.msra.mxu0 0.0
    %711 = vmatprep.subr.mxu0 0.0
    %712 = vmatpush1.msra.mxu0 0.0
    %713 = vmatprep.subr.mxu0 0.0
    %714 = vmatpush1.msra.mxu0 %v253
    %715 = vmatprep.subr.mxu0 0.0
    %716 = vmatpush1.msra.mxu0 %v252
    %717 = vmatprep.subr.mxu0 0.0
    %718 = vmatpush1.msra.mxu0 %v251
    %719 = vmatprep.subr.mxu0 0.0
    %720 = vmatpush2.msra.mxu0 0.0
    %721 = vmatprep.subr.mxu0 0.0
    %722 = vmatpush2.msra.mxu0 0.0
    %723 = vmatprep.subr.mxu0 0.0
    %724 = vmatpush2.msra.mxu0 0.0
    %725 = vmatprep.subr.mxu0 0.0
    %726 = vmatpush2.msra.mxu0 0.0
    %727 = vmatprep.subr.mxu0 0.0
    %728 = vmatpush2.msra.mxu0 0.0
    %729 = vmatprep.subr.mxu0 0.0
    %730 = vmatpush2.msra.mxu0 0.0
    %731 = vmatprep.subr.mxu0 0.0
    %732 = vmatpush2.msra.mxu0 0.0
    %733 = vmatprep.subr.mxu0 0.0
    %734 = vmatpush2.msra.mxu0 0.0
    %735 = vmatprep.subr.mxu0 0.0
    %736 = vmatpush2.msra.mxu0 0.0
    %737 = vmatprep.subr.mxu0 0.0
    %738 = vmatpush2.msra.mxu0 0.0
    %739 = vmatprep.subr.mxu0 0.0
    %740 = vmatpush2.msra.mxu0 0.0
    %741 = vmatprep.subr.mxu0 0.0
    %742 = vmatpush2.msra.mxu0 0.0
    %743 = vmatprep.subr.mxu0 0.0
    %744 = vmatpush2.msra.mxu0 0.0
    %745 = vmatprep.subr.mxu0 0.0
    %746 = vmatpush2.msra.mxu0 0.0
    %747 = vmatprep.subr.mxu0 0.0
    %748 = vmatpush2.msra.mxu0 0.0
    %749 = vmatprep.subr.mxu0 0.0
    %750 = vmatpush2.msra.mxu0 0.0
    %751 = vmatprep.mubr.f32.mxu0 0.0
    %752 = vmatmul.mubr.f32.gmra.mxu0 %v685
    %v753 = vpop.f32.mrf.mxu0
    %v754 = vadd.f32 0.0, %v753
    %v755 = vpop.f32.mrf.mxu0
    %756 = vdwg.mxu0
    %v757 = vadd.f32 %v248, %v754
    %v758 = vtanh.pop %v757
    %v759 = vxor.u32 %v757, 2147483648
    %v760 = vmul.f32 %v759, 1.442695
    %v761 = vpow.pop %v760
    %v762 = vadd.f32 %v761, 1.0
    %v763 = vrcp.pop %v762
    %v764 = vmul.f32 1.0, %v763
    %v765 = vsel %vm258, %v758, %v764
    %v767 = vrot.slane %v674, 6
    %v769 = vmul.f32 %v765, %v767
    %771 = vrot.lane.b32.xlu0 %v765, 80
    %v772 = vpop.permute.xlu0 %771
    %v774 = vmul.f32 %v765, %v772
    %776 = vrot.lane.b32.xlu0 %v774, 24
    %v777 = vpop.permute.xlu0 %776
    %v779 = vadd.f32 %v769, %v777
    %v780 = vtanh.pop %v779
    %782 = vrot.lane.b32.xlu0 %v780, 48
    %v783 = vpop.permute.xlu0 %782
    %v785 = vmul.f32 %v765, %v783
    %787 = vrot.lane.b32.xlu0 %v785, 56
    %v788 = vpop.permute.xlu0 %787
    %v789 = vsel %vm169, %v788, 0
    %791 = vmatprep.subr.mxu0 0.0
    %792 = vmatpush1.msra.mxu0 0.0
    %793 = vmatprep.subr.mxu0 0.0
    %794 = vmatpush1.msra.mxu0 0.0
    %795 = vmatprep.subr.mxu0 0.0
    %796 = vmatpush1.msra.mxu0 0.0
    %797 = vmatprep.subr.mxu0 0.0
    %798 = vmatpush1.msra.mxu0 0.0
    %799 = vmatprep.subr.mxu0 0.0
    %800 = vmatpush1.msra.mxu0 0.0
    %801 = vmatprep.subr.mxu0 0.0
    %802 = vmatpush1.msra.mxu0 0.0
    %803 = vmatprep.subr.mxu0 0.0
    %804 = vmatpush1.msra.mxu0 0.0
    %805 = vmatprep.subr.mxu0 0.0
    %806 = vmatpush1.msra.mxu0 0.0
    %807 = vmatprep.subr.mxu0 0.0
    %808 = vmatpush1.msra.mxu0 0.0
    %809 = vmatprep.subr.mxu0 0.0
    %810 = vmatpush1.msra.mxu0 0.0
    %811 = vmatprep.subr.mxu0 0.0
    %812 = vmatpush1.msra.mxu0 0.0
    %813 = vmatprep.subr.mxu0 0.0
    %814 = vmatpush1.msra.mxu0 0.0
    %815 = vmatprep.subr.mxu0 0.0
    %816 = vmatpush1.msra.mxu0 0.0
    %817 = vmatprep.subr.mxu0 0.0
    %818 = vmatpush1.msra.mxu0 %v253
    %819 = vmatprep.subr.mxu0 0.0
    %820 = vmatpush1.msra.mxu0 %v252
    %821 = vmatprep.subr.mxu0 0.0
    %822 = vmatpush1.msra.mxu0 %v251
    %823 = vmatprep.subr.mxu0 0.0
    %824 = vmatpush2.msra.mxu0 0.0
    %825 = vmatprep.subr.mxu0 0.0
    %826 = vmatpush2.msra.mxu0 0.0
    %827 = vmatprep.subr.mxu0 0.0
    %828 = vmatpush2.msra.mxu0 0.0
    %829 = vmatprep.subr.mxu0 0.0
    %830 = vmatpush2.msra.mxu0 0.0
    %831 = vmatprep.subr.mxu0 0.0
    %832 = vmatpush2.msra.mxu0 0.0
    %833 = vmatprep.subr.mxu0 0.0
    %834 = vmatpush2.msra.mxu0 0.0
    %835 = vmatprep.subr.mxu0 0.0
    %836 = vmatpush2.msra.mxu0 0.0
    %837 = vmatprep.subr.mxu0 0.0
    %838 = vmatpush2.msra.mxu0 0.0
    %839 = vmatprep.subr.mxu0 0.0
    %840 = vmatpush2.msra.mxu0 0.0
    %841 = vmatprep.subr.mxu0 0.0
    %842 = vmatpush2.msra.mxu0 0.0
    %843 = vmatprep.subr.mxu0 0.0
    %844 = vmatpush2.msra.mxu0 0.0
    %845 = vmatprep.subr.mxu0 0.0
    %846 = vmatpush2.msra.mxu0 0.0
    %847 = vmatprep.subr.mxu0 0.0
    %848 = vmatpush2.msra.mxu0 0.0
    %849 = vmatprep.subr.mxu0 0.0
    %850 = vmatpush2.msra.mxu0 0.0
    %851 = vmatprep.subr.mxu0 0.0
    %852 = vmatpush2.msra.mxu0 0.0
    %853 = vmatprep.subr.mxu0 0.0
    %854 = vmatpush2.msra.mxu0 0.0
    %855 = vmatprep.mubr.f32.mxu0 0.0
    %856 = vmatmul.mubr.f32.gmra.mxu0 %v789
    %v857 = vpop.f32.mrf.mxu0
    %v858 = vadd.f32 0.0, %v857
    %v859 = vpop.f32.mrf.mxu0
    %860 = vdwg.mxu0
    %v862 = vrot.slane %v858, 6
    %v864 = vadd.f32 %v248, %v862
    %v865 = vtanh.pop %v864
    %v866 = vxor.u32 %v864, 2147483648
    %v867 = vmul.f32 %v866, 1.442695
    %v868 = vpow.pop %v867
    %v869 = vadd.f32 %v868, 1.0
    %v870 = vrcp.pop %v869
    %v871 = vmul.f32 1.0, %v870
    %v872 = vsel %vm258, %v865, %v871
    %v874 = vrot.slane %v779, 6
    %v876 = vmul.f32 %v872, %v874
    %878 = vrot.lane.b32.xlu0 %v872, 80
    %v879 = vpop.permute.xlu0 %878
    %v881 = vmul.f32 %v872, %v879
    %883 = vrot.lane.b32.xlu0 %v881, 24
    %v884 = vpop.permute.xlu0 %883
    %v886 = vadd.f32 %v876, %v884
    %v887 = vtanh.pop %v886
    %889 = vrot.lane.b32.xlu0 %v887, 48
    %v890 = vpop.permute.xlu0 %889
    %v892 = vmul.f32 %v872, %v890
    %v894 = vrot.slane %v892, 2
    %895 = vrot.lane.b32.xlu0 %v894, 56
    %v896 = vpop.permute.xlu0 %895
    %v897 = vsel %vm169, %v896, 0
    %899 = vmatprep.subr.mxu0 0.0
    %900 = vmatpush1.msra.mxu0 0.0
    %901 = vmatprep.subr.mxu0 0.0
    %902 = vmatpush1.msra.mxu0 0.0
    %903 = vmatprep.subr.mxu0 0.0
    %904 = vmatpush1.msra.mxu0 0.0
    %905 = vmatprep.subr.mxu0 0.0
    %906 = vmatpush1.msra.mxu0 0.0
    %907 = vmatprep.subr.mxu0 0.0
    %908 = vmatpush1.msra.mxu0 0.0
    %909 = vmatprep.subr.mxu0 0.0
    %910 = vmatpush1.msra.mxu0 0.0
    %911 = vmatprep.subr.mxu0 0.0
    %912 = vmatpush1.msra.mxu0 0.0
    %913 = vmatprep.subr.mxu0 0.0
    %914 = vmatpush1.msra.mxu0 0.0
    %915 = vmatprep.subr.mxu0 0.0
    %916 = vmatpush1.msra.mxu0 0.0
    %917 = vmatprep.subr.mxu0 0.0
    %918 = vmatpush1.msra.mxu0 0.0
    %919 = vmatprep.subr.mxu0 0.0
    %920 = vmatpush1.msra.mxu0 0.0
    %921 = vmatprep.subr.mxu0 0.0
    %922 = vmatpush1.msra.mxu0 0.0
    %923 = vmatprep.subr.mxu0 0.0
    %924 = vmatpush1.msra.mxu0 0.0
    %925 = vmatprep.subr.mxu0 0.0
    %926 = vmatpush1.msra.mxu0 %v253
    %927 = vmatprep.subr.mxu0 0.0
    %928 = vmatpush1.msra.mxu0 %v252
    %929 = vmatprep.subr.mxu0 0.0
    %930 = vmatpush1.msra.mxu0 %v251
    %931 = vmatprep.subr.mxu0 0.0
    %932 = vmatpush2.msra.mxu0 0.0
    %933 = vmatprep.subr.mxu0 0.0
    %934 = vmatpush2.msra.mxu0 0.0
    %935 = vmatprep.subr.mxu0 0.0
    %936 = vmatpush2.msra.mxu0 0.0
    %937 = vmatprep.subr.mxu0 0.0
    %938 = vmatpush2.msra.mxu0 0.0
    %939 = vmatprep.subr.mxu0 0.0
    %940 = vmatpush2.msra.mxu0 0.0
    %941 = vmatprep.subr.mxu0 0.0
    %942 = vmatpush2.msra.mxu0 0.0
    %943 = vmatprep.subr.mxu0 0.0
    %944 = vmatpush2.msra.mxu0 0.0
    %945 = vmatprep.subr.mxu0 0.0
    %946 = vmatpush2.msra.mxu0 0.0
    %947 = vmatprep.subr.mxu0 0.0
    %948 = vmatpush2.msra.mxu0 0.0
    %949 = vmatprep.subr.mxu0 0.0
    %950 = vmatpush2.msra.mxu0 0.0
    %951 = vmatprep.subr.mxu0 0.0
    %952 = vmatpush2.msra.mxu0 0.0
    %953 = vmatprep.subr.mxu0 0.0
    %954 = vmatpush2.msra.mxu0 0.0
    %955 = vmatprep.subr.mxu0 0.0
    %956 = vmatpush2.msra.mxu0 0.0
    %957 = vmatprep.subr.mxu0 0.0
    %958 = vmatpush2.msra.mxu0 0.0
    %959 = vmatprep.subr.mxu0 0.0
    %960 = vmatpush2.msra.mxu0 0.0
    %961 = vmatprep.subr.mxu0 0.0
    %962 = vmatpush2.msra.mxu0 0.0
    %963 = vmatprep.mubr.f32.mxu0 0.0
    %964 = vmatmul.mubr.f32.gmra.mxu0 %v897
    %v965 = vpop.f32.mrf.mxu0
    %v966 = vadd.f32 0.0, %v965
    %v967 = vpop.f32.mrf.mxu0
    %968 = vdwg.mxu0
    %v970 = vrot.slane %v966, 4
    %v972 = vadd.f32 %v248, %v970
    %v973 = vtanh.pop %v972
    %v974 = vxor.u32 %v972, 2147483648
    %v975 = vmul.f32 %v974, 1.442695
    %v976 = vpow.pop %v975
    %v977 = vadd.f32 %v976, 1.0
    %v978 = vrcp.pop %v977
    %v979 = vmul.f32 1.0, %v978
    %v980 = vsel %vm258, %v973, %v979
    %v982 = vrot.slane %v886, 6
    %v984 = vmul.f32 %v980, %v982
    %986 = vrot.lane.b32.xlu0 %v980, 80
    %v987 = vpop.permute.xlu0 %986
    %v989 = vmul.f32 %v980, %v987
    %991 = vrot.lane.b32.xlu0 %v989, 24
    %v992 = vpop.permute.xlu0 %991
    %v994 = vadd.f32 %v984, %v992
    %v995 = vtanh.pop %v994
    %997 = vrot.lane.b32.xlu0 %v995, 48
    %v998 = vpop.permute.xlu0 %997
    %v1000 = vmul.f32 %v980, %v998
    %v1002 = vrot.slane %v1000, 4
    %1003 = vrot.lane.b32.xlu0 %v1002, 56
    %v1004 = vpop.permute.xlu0 %1003
    %v1005 = vsel %vm169, %v1004, 0
    %1007 = vmatprep.subr.mxu0 0.0
    %1008 = vmatpush1.msra.mxu0 0.0
    %1009 = vmatprep.subr.mxu0 0.0
    %1010 = vmatpush1.msra.mxu0 0.0
    %1011 = vmatprep.subr.mxu0 0.0
    %1012 = vmatpush1.msra.mxu0 0.0
    %1013 = vmatprep.subr.mxu0 0.0
    %1014 = vmatpush1.msra.mxu0 0.0
    %1015 = vmatprep.subr.mxu0 0.0
    %1016 = vmatpush1.msra.mxu0 0.0
    %1017 = vmatprep.subr.mxu0 0.0
    %1018 = vmatpush1.msra.mxu0 0.0
    %1019 = vmatprep.subr.mxu0 0.0
    %1020 = vmatpush1.msra.mxu0 0.0
    %1021 = vmatprep.subr.mxu0 0.0
    %1022 = vmatpush1.msra.mxu0 0.0
    %1023 = vmatprep.subr.mxu0 0.0
    %1024 = vmatpush1.msra.mxu0 0.0
    %1025 = vmatprep.subr.mxu0 0.0
    %1026 = vmatpush1.msra.mxu0 0.0
    %1027 = vmatprep.subr.mxu0 0.0
    %1028 = vmatpush1.msra.mxu0 0.0
    %1029 = vmatprep.subr.mxu0 0.0
    %1030 = vmatpush1.msra.mxu0 0.0
    %1031 = vmatprep.subr.mxu0 0.0
    %1032 = vmatpush1.msra.mxu0 0.0
    %1033 = vmatprep.subr.mxu0 0.0
    %1034 = vmatpush1.msra.mxu0 %v253
    %1035 = vmatprep.subr.mxu0 0.0
    %1036 = vmatpush1.msra.mxu0 %v252
    %1037 = vmatprep.subr.mxu0 0.0
    %1038 = vmatpush1.msra.mxu0 %v251
    %1039 = vmatprep.subr.mxu0 0.0
    %1040 = vmatpush2.msra.mxu0 0.0
    %1041 = vmatprep.subr.mxu0 0.0
    %1042 = vmatpush2.msra.mxu0 0.0
    %1043 = vmatprep.subr.mxu0 0.0
    %1044 = vmatpush2.msra.mxu0 0.0
    %1045 = vmatprep.subr.mxu0 0.0
    %1046 = vmatpush2.msra.mxu0 0.0
    %1047 = vmatprep.subr.mxu0 0.0
    %1048 = vmatpush2.msra.mxu0 0.0
    %1049 = vmatprep.subr.mxu0 0.0
    %1050 = vmatpush2.msra.mxu0 0.0
    %1051 = vmatprep.subr.mxu0 0.0
    %1052 = vmatpush2.msra.mxu0 0.0
    %1053 = vmatprep.subr.mxu0 0.0
    %1054 = vmatpush2.msra.mxu0 0.0
    %1055 = vmatprep.subr.mxu0 0.0
    %1056 = vmatpush2.msra.mxu0 0.0
    %1057 = vmatprep.subr.mxu0 0.0
    %1058 = vmatpush2.msra.mxu0 0.0
    %1059 = vmatprep.subr.mxu0 0.0
    %1060 = vmatpush2.msra.mxu0 0.0
    %1061 = vmatprep.subr.mxu0 0.0
    %1062 = vmatpush2.msra.mxu0 0.0
    %1063 = vmatprep.subr.mxu0 0.0
    %1064 = vmatpush2.msra.mxu0 0.0
    %1065 = vmatprep.subr.mxu0 0.0
    %1066 = vmatpush2.msra.mxu0 0.0
    %1067 = vmatprep.subr.mxu0 0.0
    %1068 = vmatpush2.msra.mxu0 0.0
    %1069 = vmatprep.subr.mxu0 0.0
    %1070 = vmatpush2.msra.mxu0 0.0
    %1071 = vmatprep.mubr.f32.mxu0 0.0
    %1072 = vmatmul.mubr.f32.gmra.mxu0 %v1005
    %v1073 = vpop.f32.mrf.mxu0
    %v1074 = vadd.f32 0.0, %v1073
    %v1075 = vpop.f32.mrf.mxu0
    %1076 = vdwg.mxu0
    %v1078 = vrot.slane %v1074, 2
    %v1080 = vadd.f32 %v248, %v1078
    %v1081 = vtanh.pop %v1080
    %v1082 = vxor.u32 %v1080, 2147483648
    %v1083 = vmul.f32 %v1082, 1.442695
    %v1084 = vpow.pop %v1083
    %v1085 = vadd.f32 %v1084, 1.0
    %v1086 = vrcp.pop %v1085
    %v1087 = vmul.f32 1.0, %v1086
    %v1088 = vsel %vm258, %v1081, %v1087
    %v1090 = vrot.slane %v994, 6
    %v1092 = vmul.f32 %v1088, %v1090
    %1094 = vrot.lane.b32.xlu0 %v1088, 80
    %v1095 = vpop.permute.xlu0 %1094
    %v1097 = vmul.f32 %v1088, %v1095
    %1099 = vrot.lane.b32.xlu0 %v1097, 24
    %v1100 = vpop.permute.xlu0 %1099
    %v1102 = vadd.f32 %v1092, %v1100
    %v1103 = vtanh.pop %v1102
    %1105 = vrot.lane.b32.xlu0 %v1103, 48
    %v1106 = vpop.permute.xlu0 %1105
    %v1108 = vmul.f32 %v1088, %v1106
    %vm1109 = vcmask 1041408
    %v1110 = vsel %vm1109, %v357, %v464
    %vm1111 = vcmask 1043456
    %v1112 = vsel %vm1111, %v1110, %v572
    %v1113 = vsel %vm78, %v1112, %v680
    %v1114 = vsel %vm1109, %v785, %v892
    %v1115 = vsel %vm1111, %v1114, %v1000
    %v1116 = vsel %vm78, %v1115, %v1108
    %v1117 = vld [vmem:[#allocation5] sm:$0xff]
    %v1118 = vld [vmem:[#allocation5 + $0x8] sm:$0xff]
    %v1119 = vld [vmem:[#allocation5 + $0x10] sm:$0xff]
    %v1120 = vld [vmem:[%s7] sm:$0x1]
    %v1122 = vlaneseq
    %v1123 = vshrl.u32 %v1122, 7
    %v1124 = vsub.s32 0, %v1123
    %v1125 = vrot.slane %v1120, %v1124
    %1129 = vrot.lane.b32.xlu0 %v1113, 56
    %v1130 = vpop.permute.xlu0 %1129
    %1131 = vrot.lane.b32.xlu0 %v1116, 56
    %v1132 = vpop.permute.xlu0 %1131
    %v1133 = vsel %vm169, %v1130, 0
    %v1135 = vsel %vm169, %v1132, 0
    %1137 = vmatprep.subr.mxu0 0.0
    %1138 = vmatpush1.msra.mxu0 0.0
    %1139 = vmatprep.subr.mxu0 0.0
    %1140 = vmatpush1.msra.mxu0 0.0
    %1141 = vmatprep.subr.mxu0 0.0
    %1142 = vmatpush1.msra.mxu0 0.0
    %1143 = vmatprep.subr.mxu0 0.0
    %1144 = vmatpush1.msra.mxu0 0.0
    %1145 = vmatprep.subr.mxu0 0.0
    %1146 = vmatpush1.msra.mxu0 0.0
    %1147 = vmatprep.subr.mxu0 0.0
    %1148 = vmatpush1.msra.mxu0 0.0
    %1149 = vmatprep.subr.mxu0 0.0
    %1150 = vmatpush1.msra.mxu0 0.0
    %1151 = vmatprep.subr.mxu0 0.0
    %1152 = vmatpush1.msra.mxu0 0.0
    %1153 = vmatprep.subr.mxu0 0.0
    %1154 = vmatpush1.msra.mxu0 0.0
    %1155 = vmatprep.subr.mxu0 0.0
    %1156 = vmatpush1.msra.mxu0 0.0
    %1157 = vmatprep.subr.mxu0 0.0
    %1158 = vmatpush1.msra.mxu0 0.0
    %1159 = vmatprep.subr.mxu0 0.0
    %1160 = vmatpush1.msra.mxu0 0.0
    %1161 = vmatprep.subr.mxu0 0.0
    %1162 = vmatpush1.msra.mxu0 0.0
    %1163 = vmatprep.subr.mxu0 0.0
    %1164 = vmatpush1.msra.mxu0 %v1119
    %1165 = vmatprep.subr.mxu0 0.0
    %1166 = vmatpush1.msra.mxu0 %v1118
    %1167 = vmatprep.subr.mxu0 0.0
    %1168 = vmatpush1.msra.mxu0 %v1117
    %1169 = vmatprep.subr.mxu0 0.0
    %1170 = vmatpush2.msra.mxu0 0.0
    %1171 = vmatprep.subr.mxu0 0.0
    %1172 = vmatpush2.msra.mxu0 0.0
    %1173 = vmatprep.subr.mxu0 0.0
    %1174 = vmatpush2.msra.mxu0 0.0
    %1175 = vmatprep.subr.mxu0 0.0
    %1176 = vmatpush2.msra.mxu0 0.0
    %1177 = vmatprep.subr.mxu0 0.0
    %1178 = vmatpush2.msra.mxu0 0.0
    %1179 = vmatprep.subr.mxu0 0.0
    %1180 = vmatpush2.msra.mxu0 0.0
    %1181 = vmatprep.subr.mxu0 0.0
    %1182 = vmatpush2.msra.mxu0 0.0
    %1183 = vmatprep.subr.mxu0 0.0
    %1184 = vmatpush2.msra.mxu0 0.0
    %1185 = vmatprep.subr.mxu0 0.0
    %1186 = vmatpush2.msra.mxu0 0.0
    %1187 = vmatprep.subr.mxu0 0.0
    %1188 = vmatpush2.msra.mxu0 0.0
    %1189 = vmatprep.subr.mxu0 0.0
    %1190 = vmatpush2.msra.mxu0 0.0
    %1191 = vmatprep.subr.mxu0 0.0
    %1192 = vmatpush2.msra.mxu0 0.0
    %1193 = vmatprep.subr.mxu0 0.0
    %1194 = vmatpush2.msra.mxu0 0.0
    %1195 = vmatprep.subr.mxu0 0.0
    %1196 = vmatpush2.msra.mxu0 0.0
    %1197 = vmatprep.subr.mxu0 0.0
    %1198 = vmatpush2.msra.mxu0 0.0
    %1199 = vmatprep.subr.mxu0 0.0
    %1200 = vmatpush2.msra.mxu0 0.0
    %1201 = vmatprep.mubr.f32.mxu0 0.0
    %1202 = vmatmul.mubr.f32.gmra.mxu0 %v1133
    %v1203 = vpop.f32.mrf.mxu0
    %v1204 = vadd.f32 %v1125, %v1203
    %v1205 = vpop.f32.mrf.mxu0
    %1206 = vmatprep.mubr.f32.mxu0 0.0
    %1207 = vmatmul.mubr.f32.gmra.mxu0 %v1135
    %v1208 = vpop.f32.mrf.mxu0
    %v1209 = vadd.f32 %v1125, %v1208
    %v1210 = vpop.f32.mrf.mxu0
    %1211 = vdwg.mxu0
    %1212 = vst [vmem:[#allocation7] sm:$0xff] %v1204
    %1213 = vst [vmem:[#allocation7 + $0x8] sm:$0xff] %v1209
    // Predicated region
    $region42: #{tpu_custom_call.1} parent=1 // pred_check
      _
    $region43: #{tpu_custom_call.1} parent=1 // pred_check_branch
      %1215 = sbr.rel (0) target = $region45
    $region44: #{tpu_custom_call.1} parent=1 // pred_region
      %s1217 = ssub.s32 256, 256
      %1218 = vsyncadd [#allocation4], %s1217
      %s1219 = sshll.u32 [#allocation7], 4
      %s1220 = int_to_ptr.vmem [resolvable:$true] %s1219
      %1225 = dma.vmem_to_hbm [thread:$0]  %s1220, 256, %s8, [#allocation4], 128, 128, 8
    $region45: #{tpu_custom_call.1} parent=1 // pred_fallthru
      _
    // Predicated region
    $region46: #{tpu_custom_call.1} parent=1 // pred_check
      _
    $region47: #{tpu_custom_call.1} parent=1 // pred_check_branch
      %1227 = sbr.rel (0) target = $region49
    $region48: #{tpu_custom_call.1} parent=1 // pred_region
      %1228 = dma.done [#allocation4], 256
    $region49: #{tpu_custom_call.1} parent=1 // pred_fallthru
      _
    %1229 = vsyncpa [#allocation3], 1
    %1230 = vsyncpa [#allocation6], 1
    %1231 = vsyncpa [#allocation4], 1

</llo_original>
